<compile_context>
chip_gen: v6e
topology: v6e:2x2x1
jax: 0.10.0
libtpu: 0.0.40
codegen_flags: <defaults>
</compile_context>

<pallas_src>
import functools

import jax
import jax.numpy as jnp
import numpy as np
from jax import lax
from jax.experimental import pallas as pl
from jax.experimental.pallas import tpu as pltpu

LEAKY_SLOPE = 0.01  # nn.LeakyReLU default negative_slope


def _leaky_relu(x):
    return jnp.where(x >= 0, x, LEAKY_SLOPE * x)


def _make_bilinear_kernel(hidden, tq):
    """Kernel factory; `hidden` (H) and `tq` (S_tgt tile) are static."""
    H = hidden

    def kernel(mixed_ref, wcat_ref, bcat_ref, wbil_ref, bias_ref, out_ref,
               t_scratch, h2_scratch):
        # Ref shapes inside the kernel:
        #   mixed_ref : (S, D)   bf16  ScalarMix'ed decoder states, this batch elem
        #   wcat_ref  : (D, 2H)  bf16  [W_src | W_tgt]
        #   bcat_ref  : (1, 2H)  f32   [b_src | b_tgt]
        #   wbil_ref  : (H, H)   bf16  bilinear weight
        #   bias_ref  : (1, S)   f32   additive pointer-mask bias (0 / -inf)
        #   out_ref   : (Tq, S)  f32   aligned[tgt_tile, src]
        #   t_scratch : (S, H)   bf16  h1 @ W_bil   (cached per batch element)
        #   h2_scratch: (S, H)   bf16  h2           (cached per batch element)
        j = pl.program_id(1)

        # Once per batch element (tile axis is "arbitrary" => sequential per
        # core): fused src|tgt projection for the full sequence on the MXU,
        # then pre-contract the src side with the bilinear weight.
        @pl.when(j == 0)
        def _():
            h_cat = _leaky_relu(
                jnp.dot(mixed_ref[...], wcat_ref[...],
                        preferred_element_type=jnp.float32)
                + bcat_ref[...])                                   # (S, 2H) f32
            h1 = h_cat[:, :H].astype(jnp.bfloat16)                 # src side
            h2_scratch[...] = h_cat[:, H:].astype(jnp.bfloat16)    # tgt side
            t_scratch[...] = jnp.dot(
                h1, wbil_ref[...],
                preferred_element_type=jnp.float32).astype(jnp.bfloat16)

        # Per S_tgt tile: contract the H axes directly (no explicit transpose).
        row = pl.multiple_of(j * tq, tq)
        h2_tile = h2_scratch[pl.ds(row, tq), :]                    # (Tq, H) bf16
        scores = lax.dot_general(
            h2_tile, t_scratch[...],
            dimension_numbers=(((1,), (1,)), ((), ())),
            preferred_element_type=jnp.float32)                    # (Tq, S) f32

        # Additive pointer-mask bias, broadcast over the tgt rows — matches
        # `aligned[pointer_mask.expand_as(aligned)] = float('-inf')`.
        out_ref[...] = scores + bias_ref[...]

    return kernel


def bilinear_aligner(mixed, w_cat, b_cat, w_bil, mask_bias, *, tq=128):
    """mixed (B,S,D) bf16, w_cat (D,2H) bf16, b_cat (1,2H) f32, w_bil (H,H) bf16,
    mask_bias (B,1,S) f32 (0 keep / -inf masked).  Returns (B, S_tgt, S_src) f32."""
    B, S, D = mixed.shape
    H2 = w_cat.shape[1]
    H = H2 // 2
    tq = min(tq, S)                      # 128-aligned tgt tiles
    assert S % tq == 0, "sequence length must be a multiple of the tgt tile"
    assert S % 128 == 0 and H % 128 == 0, "S and H must be lane-aligned (128)"
    n_tiles = S // tq

    grid_spec = pltpu.PrefetchScalarGridSpec(
        num_scalar_prefetch=0,
        grid=(B, n_tiles),
        in_specs=[
            # Full-sequence mixed hidden states for this batch element; block
            # index is constant along the tile axis, so the tile is DMA'd once
            # per batch element and reused across all tgt tiles.
            pl.BlockSpec((None, S, D), lambda b, j: (b, 0, 0)),
            pl.BlockSpec((D, H2), lambda b, j: (0, 0)),          # W_src | W_tgt
            pl.BlockSpec((1, H2), lambda b, j: (0, 0)),          # b_src | b_tgt
            pl.BlockSpec((H, H), lambda b, j: (0, 0)),           # W_bilinear
            pl.BlockSpec((None, 1, S), lambda b, j: (b, 0, 0)),  # mask bias
        ],
        # Lane-dense output tile: last dim = S_src (multiple of 128) => unmasked
        # vector stores.
        out_specs=pl.BlockSpec((None, tq, S), lambda b, j: (b, j, 0)),
        scratch_shapes=[
            pltpu.VMEM((S, H), jnp.bfloat16),   # t  = LeakyReLU(dec@Wsrc+b) @ Wbil
            pltpu.VMEM((S, H), jnp.bfloat16),   # h2 = LeakyReLU(dec@Wtgt+b)
        ],
    )

    return pl.pallas_call(
        _make_bilinear_kernel(H, tq),
        out_shape=jax.ShapeDtypeStruct((B, S, S), jnp.float32),
        grid_spec=grid_spec,
        compiler_params=pltpu.CompilerParams(
            # Batch axis parallel (megacore sharding); tile axis must stay
            # sequential because the src-side products are cached in scratch at
            # tile 0.  At production S/D also raise vmem_limit_bytes here.
            dimension_semantics=("parallel", "arbitrary")),
    )(mixed, w_cat, b_cat, w_bil, mask_bias)


@functools.partial(jax.jit, static_argnames=("bart_layers",))
def text2graph_pointer_forward(decoder_input_ids, normal_tokens,
                               closing_pointer_mask, decoder_hidden_states,
                               params, bart_layers):
    """Glue reproducing Text2GraphInline.forward mask construction + aligner."""
    # --- pointer-mask construction (Text2GraphInline.forward) ---
    is_normal = normal_tokens[decoder_input_ids]                     # (B, S) bool
    # is_normal_token[:, :-1] = is_normal_token[:, 1:]
    is_normal = jnp.concatenate([is_normal[:, 1:], is_normal[:, -1:]], axis=1)
    pointer_masks = closing_pointer_mask & is_normal[:, None, :]     # (B, 1, S)
    # Positions that are NOT valid pointer targets get -inf inside the aligner
    # (kept as -inf to match module semantics even though a fully-masked row
    # would NaN a downstream softmax).
    mask_bool = ~pointer_masks
    mask_bias = jnp.where(mask_bool, -jnp.inf, 0.0).astype(jnp.float32)

    # --- ScalarMix folded out of the kernel (cheap weighted layer sum in XLA) ---
    dec_h = decoder_hidden_states[-bart_layers:].astype(jnp.float32)  # (L, B, S, D)
    mix_w = (jax.nn.softmax(params["scalar_mix_scalars"]) *
             params["scalar_mix_gamma"])
    mixed = jnp.einsum('l,lbsd->bsd', mix_w, dec_h)                   # (B, S, D)

    # --- fused src|tgt projection weights; bf16 MXU operands, f32 accumulation ---
    w_cat = jnp.concatenate([params["w_src"], params["w_tgt"]], axis=1)   # (D, 2H)
    b_cat = jnp.concatenate([params["b_src"], params["b_tgt"]], axis=1)   # (1, 2H)

    mixed_bf = mixed.astype(jnp.bfloat16)
    w_cat_bf = w_cat.astype(jnp.bfloat16)
    w_bil_bf = params["w_bilinear"].astype(jnp.bfloat16)
    b_cat_f32 = b_cat.astype(jnp.float32)

    aligned = bilinear_aligner(mixed_bf, w_cat_bf, b_cat_f32, w_bil_bf, mask_bias)
    return aligned, (mixed_bf, w_cat_bf, b_cat_f32, w_bil_bf, mask_bias)


def _reference(mixed_bf, w_cat_bf, b_cat, w_bil_bf, mask_bias):
    """Pure-JAX reference mirroring the kernel's bf16-operand / f32-accum math."""
    H = w_bil_bf.shape[0]
    h_cat = _leaky_relu(
        jnp.einsum('bsd,dh->bsh', mixed_bf, w_cat_bf,
                   preferred_element_type=jnp.float32) + b_cat)
    h1 = h_cat[..., :H].astype(jnp.bfloat16)
    h2 = h_cat[..., H:].astype(jnp.bfloat16)
    t = jnp.einsum('bax,xy->bay', h1, w_bil_bf,
                   preferred_element_type=jnp.float32).astype(jnp.bfloat16)
    aligned = jnp.einsum('bqy,bay->bqa', h2, t,
                         preferred_element_type=jnp.float32)
    return aligned + mask_bias


if __name__ == "__main__":
    # Small but lane-aligned, tiling-exercising problem sizes:
    #   batch=2, seq=256 (two S_tgt tiles of 128), d_model=128, hidden=128,
    #   bart_layers=3, vocab=64.
    B, S, D, H, L, V = 2, 256, 128, 128, 3, 64

    key = jax.random.PRNGKey(0)
    keys = jax.random.split(key, 10)

    # Deterministic "parameters" (the real bilinear_weight is zero-initialized —
    # small random values are used so the kernel exercises the matmul path).
    params = {
        "w_src": jax.random.normal(keys[0], (D, H), jnp.float32) * 0.1,
        "b_src": jax.random.normal(keys[1], (1, H), jnp.float32) * 0.1,
        "w_tgt": jax.random.normal(keys[2], (D, H), jnp.float32) * 0.1,
        "b_tgt": jax.random.normal(keys[3], (1, H), jnp.float32) * 0.1,
        "w_bilinear": jax.random.normal(keys[4], (H, H), jnp.float32) * 0.1,
        "scalar_mix_scalars": jax.random.normal(keys[5], (L,), jnp.float32) * 0.5,
        "scalar_mix_gamma": jnp.float32(1.0),
    }

    # Synthetic inputs (stand-ins for the tokenizer / BART model outputs).
    decoder_input_ids = jax.random.randint(keys[6], (B, S), 0, V, jnp.int32)
    normal_tokens = (jnp.arange(V) % 3 == 0)                          # fake "Ġ..." tokens
    closing_pointer_mask = jax.random.bernoulli(keys[7], 0.7, (B, 1, S))
    # TODO(synk): decoder_hidden_states come from the pretrained BART decoder,
    # which is not reproducible here; they are synthesized deterministically.
    decoder_hidden_states = jax.random.normal(keys[8], (L + 1, B, S, D), jnp.float32)

    aligned, kernel_inputs = text2graph_pointer_forward(
        decoder_input_ids, normal_tokens, closing_pointer_mask,
        decoder_hidden_states, params, L)
    aligned = jax.block_until_ready(aligned)

    ref = _reference(*kernel_inputs)
    np.testing.assert_allclose(np.asarray(aligned), np.asarray(ref),
                               rtol=1e-3, atol=1e-3)
    print("KERNEL_OK")
</pallas_src>

<mosaic_0001>
module attributes {stable_mosaic.version = 11 : i64} {
  func.func @kernel(%arg0: i32, %arg1: i32, %arg2: memref<1x256x128xbf16, #tpu.memory_space<vmem>>, %arg3: memref<128x256xbf16, #tpu.memory_space<vmem>>, %arg4: memref<1x256xf32, #tpu.memory_space<vmem>>, %arg5: memref<128x128xbf16, #tpu.memory_space<vmem>>, %arg6: memref<1x1x256xf32, #tpu.memory_space<vmem>>, %arg7: memref<1x128x256xf32, #tpu.memory_space<vmem>>, %arg8: memref<256x128xbf16, #tpu.memory_space<vmem>>, %arg9: memref<256x128xbf16, #tpu.memory_space<vmem>>) attributes {dimension_semantics = [#tpu.dimension_semantics<parallel>, #tpu.dimension_semantics<arbitrary>], iteration_bounds = array<i64: 2, 2>, scalar_prefetch = 0 : i64, scratch_operands = 2 : i64, tpu.core_type = #tpu.core_type<tc>, window_params = [{transform_indices = @transform_0, window_bounds = array<i64: 1, 256, 128>}, {pipeline_mode = #tpu.pipeline_mode<synchronous>, transform_indices = @transform_1, window_bounds = array<i64: 128, 256>}, {pipeline_mode = #tpu.pipeline_mode<synchronous>, transform_indices = @transform_2, window_bounds = array<i64: 1, 256>}, {pipeline_mode = #tpu.pipeline_mode<synchronous>, transform_indices = @transform_3, window_bounds = array<i64: 128, 128>}, {transform_indices = @transform_4, window_bounds = array<i64: 1, 1, 256>}, {transform_indices = @transform_5, window_bounds = array<i64: 1, 128, 256>}]} {
    %c0_i32 = arith.constant 0 : i32
    %0 = arith.cmpi eq, %arg1, %c0_i32 : i32
    %1 = arith.extui %0 : i1 to i32
    %c0_i32_0 = arith.constant 0 : i32
    %2 = arith.cmpi ne, %1, %c0_i32_0 : i32
    scf.if %2 {
      %c0_9 = arith.constant 0 : index
      %c0_10 = arith.constant 0 : index
      %c0_11 = arith.constant 0 : index
      %16 = vector.load %arg2[%c0_9, %c0_10, %c0_11] : memref<1x256x128xbf16, #tpu.memory_space<vmem>>, vector<1x256x128xbf16>
      %17 = vector.shape_cast %16 : vector<1x256x128xbf16> to vector<256x128xbf16>
      %c0_12 = arith.constant 0 : index
      %c0_13 = arith.constant 0 : index
      %18 = vector.load %arg3[%c0_12, %c0_13] : memref<128x256xbf16, #tpu.memory_space<vmem>>, vector<128x256xbf16>
      %cst_14 = arith.constant dense<0.000000e+00> : vector<256x256xf32>
      %19 = tpu.matmul %17, %18, %cst_14 {dimension_numbers = #tpu.dot_dimension_numbers<[1], [0], [0], [1], [0, 0, 1, 1], [], []>} : vector<256x128xbf16>, vector<128x256xbf16>, vector<256x256xf32> -> vector<256x256xf32>
      %c0_15 = arith.constant 0 : index
      %c0_16 = arith.constant 0 : index
      %20 = vector.load %arg4[%c0_15, %c0_16] : memref<1x256xf32, #tpu.memory_space<vmem>>, vector<1x256xf32>
      %21 = vector.broadcast %20 : vector<1x256xf32> to vector<256x256xf32>
      %22 = arith.addf %19, %21 : vector<256x256xf32>
      %cst_17 = arith.constant 0.000000e+00 : f32
      %23 = vector.broadcast %cst_17 : f32 to vector<256x256xf32>
      %24 = arith.cmpf oge, %22, %23 : vector<256x256xf32>
      %cst_18 = arith.constant 0.00999999977 : f32
      %25 = vector.broadcast %cst_18 : f32 to vector<256x256xf32>
      %26 = arith.mulf %25, %22 : vector<256x256xf32>
      %27 = arith.select %24, %22, %26 : vector<256x256xi1>, vector<256x256xf32>
      %28 = vector.extract_strided_slice %27 {offsets = [0, 0], sizes = [256, 128], strides = [1, 1]} : vector<256x256xf32> to vector<256x128xf32>
      %29 = arith.truncf %28 : vector<256x128xf32> to vector<256x128xbf16>
      %30 = vector.extract_strided_slice %27 {offsets = [0, 128], sizes = [256, 128], strides = [1, 1]} : vector<256x256xf32> to vector<256x128xf32>
      %31 = arith.truncf %30 : vector<256x128xf32> to vector<256x128xbf16>
      %c0_19 = arith.constant 0 : index
      %c0_20 = arith.constant 0 : index
      %32 = vector.load %arg9[%c0_19, %c0_20] : memref<256x128xbf16, #tpu.memory_space<vmem>>, vector<256x128xbf16>
      tpu.vector_store %arg9[%c0_19, %c0_20], %31 {strides = array<i32>} : memref<256x128xbf16, #tpu.memory_space<vmem>>, vector<256x128xbf16>,
      %c0_21 = arith.constant 0 : index
      %c0_22 = arith.constant 0 : index
      %33 = vector.load %arg5[%c0_21, %c0_22] : memref<128x128xbf16, #tpu.memory_space<vmem>>, vector<128x128xbf16>
      %cst_23 = arith.constant dense<0.000000e+00> : vector<256x128xf32>
      %34 = tpu.matmul %29, %33, %cst_23 {dimension_numbers = #tpu.dot_dimension_numbers<[1], [0], [0], [1], [0, 0, 1, 1], [], []>} : vector<256x128xbf16>, vector<128x128xbf16>, vector<256x128xf32> -> vector<256x128xf32>
      %35 = arith.truncf %34 : vector<256x128xf32> to vector<256x128xbf16>
      %c0_24 = arith.constant 0 : index
      %c0_25 = arith.constant 0 : index
      %36 = vector.load %arg8[%c0_24, %c0_25] : memref<256x128xbf16, #tpu.memory_space<vmem>>, vector<256x128xbf16>
      tpu.vector_store %arg8[%c0_24, %c0_25], %35 {strides = array<i32>} : memref<256x128xbf16, #tpu.memory_space<vmem>>, vector<256x128xbf16>,
    } else {
    }
    %c128_i32 = arith.constant 128 : i32
    %3 = arith.muli %arg1, %c128_i32 : i32
    %4 = tpu.assume_multiple %3, 128 : i32
    %5 = arith.index_cast %4 : i32 to index
    %c0 = arith.constant 0 : index
    %6 = vector.load %arg9[%5, %c0] : memref<256x128xbf16, #tpu.memory_space<vmem>>, vector<128x128xbf16>
    %c0_1 = arith.constant 0 : index
    %c0_2 = arith.constant 0 : index
    %7 = vector.load %arg8[%c0_1, %c0_2] : memref<256x128xbf16, #tpu.memory_space<vmem>>, vector<256x128xbf16>
    %cst = arith.constant dense<0.000000e+00> : vector<128x256xf32>
    %8 = tpu.matmul %6, %7, %cst {dimension_numbers = #tpu.dot_dimension_numbers<[1], [1], [0], [0], [0, 0, 1, 0], [], []>} : vector<128x128xbf16>, vector<256x128xbf16>, vector<128x256xf32> -> vector<128x256xf32>
    %c0_3 = arith.constant 0 : index
    %c0_4 = arith.constant 0 : index
    %c0_5 = arith.constant 0 : index
    %9 = vector.load %arg6[%c0_3, %c0_4, %c0_5] : memref<1x1x256xf32, #tpu.memory_space<vmem>>, vector<1x1x256xf32>
    %10 = vector.shape_cast %9 : vector<1x1x256xf32> to vector<1x256xf32>
    %11 = vector.broadcast %10 : vector<1x256xf32> to vector<128x256xf32>
    %12 = arith.addf %8, %11 : vector<128x256xf32>
    %c0_6 = arith.constant 0 : index
    %c0_7 = arith.constant 0 : index
    %c0_8 = arith.constant 0 : index
    %13 = vector.load %arg7[%c0_6, %c0_7, %c0_8] : memref<1x128x256xf32, #tpu.memory_space<vmem>>, vector<1x128x256xf32>
    %14 = vector.shape_cast %13 : vector<1x128x256xf32> to vector<128x256xf32>
    %15 = vector.shape_cast %12 : vector<128x256xf32> to vector<1x128x256xf32>
    tpu.vector_store %arg7[%c0_6, %c0_7, %c0_8], %15 {strides = array<i32>} : memref<1x128x256xf32, #tpu.memory_space<vmem>>, vector<1x128x256xf32>,
    return
  }
  func.func @transform_0(%arg0: i32, %arg1: i32) -> (i32, i32, i32) {
    %c0_i32 = arith.constant 0 : i32
    %c0_i32_0 = arith.constant 0 : i32
    %c0_i32_1 = arith.constant 0 : i32
    return %arg0, %c0_i32, %c0_i32_0 : i32, i32, i32
  }
  func.func @transform_1(%arg0: i32, %arg1: i32) -> (i32, i32) {
    %c0_i32 = arith.constant 0 : i32
    %c0_i32_0 = arith.constant 0 : i32
    %c0_i32_1 = arith.constant 0 : i32
    return %c0_i32, %c0_i32_0 : i32, i32
  }
  func.func @transform_2(%arg0: i32, %arg1: i32) -> (i32, i32) {
    %c0_i32 = arith.constant 0 : i32
    %c0_i32_0 = arith.constant 0 : i32
    %c0_i32_1 = arith.constant 0 : i32
    return %c0_i32, %c0_i32_0 : i32, i32
  }
  func.func @transform_3(%arg0: i32, %arg1: i32) -> (i32, i32) {
    %c0_i32 = arith.constant 0 : i32
    %c0_i32_0 = arith.constant 0 : i32
    %c0_i32_1 = arith.constant 0 : i32
    return %c0_i32, %c0_i32_0 : i32, i32
  }
  func.func @transform_4(%arg0: i32, %arg1: i32) -> (i32, i32, i32) {
    %c0_i32 = arith.constant 0 : i32
    %c0_i32_0 = arith.constant 0 : i32
    %c0_i32_1 = arith.constant 0 : i32
    return %arg0, %c0_i32, %c0_i32_0 : i32, i32, i32
  }
  func.func @transform_5(%arg0: i32, %arg1: i32) -> (i32, i32, i32) {
    %c0_i32 = arith.constant 0 : i32
    %c0_i32_0 = arith.constant 0 : i32
    return %arg0, %arg1, %c0_i32 : i32, i32, i32
  }
}

</mosaic_0001>

<llo_original>
// kernel: text2graph_pointer_forward.1
$region0: #{text2graph_pointer_forward.1}
  #allocation0 [shape = 'u32[]', space=smem, size = 0x4, offset = 0x4, fixed_abs, tag = 'smem constant byte address 0x4 - core index']
  #allocation1 [shape = 'u32[144,128]{1,0:T(1,128)}', space=vmem, size = 0x12000, scoped, tag = 'internal scratch']
  #allocation2 [shape = 'bf16[256,128]{1,0:T(8,128)(2,1)}', space=vmem, size = 0x10000, scoped, tag = 'scratch operand']
  #allocation3 [shape = 'bf16[256,128]{1,0:T(8,128)(2,1)}', space=vmem, size = 0x10000, scoped, tag = 'scratch operand']
  %s0 = inlined_call_operand.vmem [shape: bf16[2,256,128], index: 0, kind: input, shape index: {}]
  %s1 = inlined_call_operand.vmem [shape: bf16[128,256], index: 1, kind: input, shape index: {}]
  %s2 = inlined_call_operand.vmem [shape: f32[1,256], index: 2, kind: input, shape index: {}]
  %s3 = inlined_call_operand.vmem [shape: bf16[128,128], index: 3, kind: input, shape index: {}]
  %s4 = inlined_call_operand.vmem [shape: f32[2,1,256], index: 4, kind: input, shape index: {}]
  %s5 = inlined_call_operand.hbm [shape: f32[2,256,256], index: 5, kind: output, shape index: {}]
  %s6 = sld [smem:[#allocation0]]
  $region57: #{text2graph_pointer_forward.1} parent=0
    _
  %s8 = ssub.s32 1, %s6
  %s9 = scalar_select 0, %s8, %s6
  $region1: #{text2graph_pointer_forward.1} parent=0
    #allocation4 [shape = 'u8[262144]{0}', space=vmem, size = 0x40000, scoped, tag = 'output window, operand 0']
    #allocation5 [shape = 's32[2]{0}', space=sflag, size = 0x8, scoped, tag = 'scoped memory for text2graph_pointer_forward.1']
    %10 = vsyncpa [#allocation5], 0
    %s11 = scalar_lea.sflag [#allocation5], 1
    %12 = vsyncpa %s11, 0
    loop: start=0, step=1, limit=6
    $region2: #{text2graph_pointer_forward.1} parent=1 // loop_pre_header
      _
    $region3: #{text2graph_pointer_forward.1} parent=1 // loop_header
      %s14 = sphi 0, %s18
      %p15 = scmp.ge.s32.totalorder %s14, 6
      %s21 = sphi 0, %s33
      %s22 = sphi 0, %s29
      %s23 = sphi 0, %s21
      %s24 = sphi 0, %s22
      %s25 = sphi 0, %s23
      %s26 = sphi 0, %s24
      %s36 = sphi 0, %s38
      %s39 = sphi 0, %s36
      %s40 = sphi 0, %s39
      %s56 = sphi 0, %s40
      %s60 = sphi 0, %s60
      %s62 = sphi 0, %s60
      %s63 = sphi 0, %s62
      %s77 = sphi 0, %s63
      %s81 = sphi 0, %s81
      %s83 = sphi 0, %s81
      %s84 = sphi 0, %s83
      %s98 = sphi 0, %s84
      %s102 = sphi 0, %s102
      %s104 = sphi 0, %s102
      %s105 = sphi 0, %s104
      %s119 = sphi 0, %s105
      %s125 = sphi 0, %s127
      %s128 = sphi 0, %s125
      %s129 = sphi 0, %s128
      %s145 = sphi 0, %s129
      %s153 = sphi 0, %s155
      %s156 = sphi 0, %s153
      %s157 = sphi 0, %s156
      %s173 = sphi 0, %s157
    $region4: #{text2graph_pointer_forward.1} parent=1 // loop_header_branch
      %17 = sbr.rel (%p15) target = $region8
    $region5: #{text2graph_pointer_forward.1} parent=1 // loop_body
      %s19 = ssub.s32 %s14, 1
      %s20 = ssub.s32 %s14, 2
      %s27 = sadd.s32 1, %s22
      %p28 = scmp.ge.s32.totalorder %s27, 2
      %s29 = scalar_select %p28, 0, %s27
      %s30 = sadd.s32 1, %s21
      %s31 = scalar_select %p28, %s30, %s21
      %p32 = scmp.ge.s32.totalorder %s31, 2
      %s33 = scalar_select %p32, 0, %s31
      %s34 = ssub.s32 %s21, %s33
      %p35 = scmp.eq.s32.totalorder %s34, 0
      %s37 = sadd.s32 %s36, 1
      %s38 = scalar_select %p35, %s36, %s37
      %p41 = pneg %p35
      %p42 = scmp.eq.s32.totalorder %s14, 3
      %p43 = por %p41, %p42
      %p44 = scmp.ne.s32.totalorder %s36, %s39
      %p45 = scmp.eq.s32.totalorder %s14, 0
      %p46 = por %p44, %p45
      %p47 = scmp.ne.s32.totalorder %s36, %s39
      %p48 = scmp.eq.s32.totalorder %s19, 3
      %p49 = por %p47, %p48
      %p50 = scmp.ne.s32.totalorder %s39, %s40
      %p51 = scmp.eq.s32.totalorder %s19, 0
      %p52 = por %p50, %p51
      %p53 = scmp.ne.s32.totalorder %s39, %s40
      %p54 = scmp.eq.s32.totalorder %s20, 3
      %p55 = por %p53, %p54
      %p57 = scmp.ne.s32.totalorder %s40, %s56
      %p58 = scmp.eq.s32.totalorder %s20, 0
      %p59 = por %p57, %p58
      %s61 = sadd.s32 %s60, 1
      %p64 = scmp.eq.s32.totalorder %s14, 3
      %p65 = scmp.ne.s32.totalorder %s60, %s62
      %p66 = scmp.eq.s32.totalorder %s14, 0
      %p67 = por %p65, %p66
      %p68 = scmp.ne.s32.totalorder %s60, %s62
      %p69 = scmp.eq.s32.totalorder %s19, 3
      %p70 = por %p68, %p69
      %p71 = scmp.ne.s32.totalorder %s62, %s63
      %p72 = scmp.eq.s32.totalorder %s19, 0
      %p73 = por %p71, %p72
      %p74 = scmp.ne.s32.totalorder %s62, %s63
      %p75 = scmp.eq.s32.totalorder %s20, 3
      %p76 = por %p74, %p75
      %p78 = scmp.ne.s32.totalorder %s63, %s77
      %p79 = scmp.eq.s32.totalorder %s20, 0
      %p80 = por %p78, %p79
      %s82 = sadd.s32 %s81, 1
      %p85 = scmp.eq.s32.totalorder %s14, 3
      %p86 = scmp.ne.s32.totalorder %s81, %s83
      %p87 = scmp.eq.s32.totalorder %s14, 0
      %p88 = por %p86, %p87
      %p89 = scmp.ne.s32.totalorder %s81, %s83
      %p90 = scmp.eq.s32.totalorder %s19, 3
      %p91 = por %p89, %p90
      %p92 = scmp.ne.s32.totalorder %s83, %s84
      %p93 = scmp.eq.s32.totalorder %s19, 0
      %p94 = por %p92, %p93
      %p95 = scmp.ne.s32.totalorder %s83, %s84
      %p96 = scmp.eq.s32.totalorder %s20, 3
      %p97 = por %p95, %p96
      %p99 = scmp.ne.s32.totalorder %s84, %s98
      %p100 = scmp.eq.s32.totalorder %s20, 0
      %p101 = por %p99, %p100
      %s103 = sadd.s32 %s102, 1
      %p106 = scmp.eq.s32.totalorder %s14, 3
      %p107 = scmp.ne.s32.totalorder %s102, %s104
      %p108 = scmp.eq.s32.totalorder %s14, 0
      %p109 = por %p107, %p108
      %p110 = scmp.ne.s32.totalorder %s102, %s104
      %p111 = scmp.eq.s32.totalorder %s19, 3
      %p112 = por %p110, %p111
      %p113 = scmp.ne.s32.totalorder %s104, %s105
      %p114 = scmp.eq.s32.totalorder %s19, 0
      %p115 = por %p113, %p114
      %p116 = scmp.ne.s32.totalorder %s104, %s105
      %p117 = scmp.eq.s32.totalorder %s20, 3
      %p118 = por %p116, %p117
      %p120 = scmp.ne.s32.totalorder %s105, %s119
      %p121 = scmp.eq.s32.totalorder %s20, 0
      %p122 = por %p120, %p121
      %s123 = ssub.s32 %s21, %s33
      %p124 = scmp.eq.s32.totalorder %s123, 0
      %s126 = sadd.s32 %s125, 1
      %s127 = scalar_select %p124, %s125, %s126
      %p130 = pneg %p124
      %p131 = scmp.eq.s32.totalorder %s14, 3
      %p132 = por %p130, %p131
      %p133 = scmp.ne.s32.totalorder %s125, %s128
      %p134 = scmp.eq.s32.totalorder %s14, 0
      %p135 = por %p133, %p134
      %p136 = scmp.ne.s32.totalorder %s125, %s128
      %p137 = scmp.eq.s32.totalorder %s19, 3
      %p138 = por %p136, %p137
      %p139 = scmp.ne.s32.totalorder %s128, %s129
      %p140 = scmp.eq.s32.totalorder %s19, 0
      %p141 = por %p139, %p140
      %p142 = scmp.ne.s32.totalorder %s128, %s129
      %p143 = scmp.eq.s32.totalorder %s20, 3
      %p144 = por %p142, %p143
      %p146 = scmp.ne.s32.totalorder %s129, %s145
      %p147 = scmp.eq.s32.totalorder %s20, 0
      %p148 = por %p146, %p147
      %s149 = ssub.s32 %s21, %s33
      %s150 = ssub.s32 %s22, %s29
      %s151 = sor.u32 %s149, %s150
      %p152 = scmp.eq.s32.totalorder %s151, 0
      %s154 = sadd.s32 %s153, 1
      %s155 = scalar_select %p152, %s153, %s154
      %p158 = pneg %p152
      %p159 = scmp.eq.s32.totalorder %s14, 3
      %p160 = por %p158, %p159
      %p161 = scmp.ne.s32.totalorder %s153, %s156
      %p162 = scmp.eq.s32.totalorder %s14, 0
      %p163 = por %p161, %p162
      %p164 = scmp.ne.s32.totalorder %s153, %s156
      %p165 = scmp.eq.s32.totalorder %s19, 3
      %p166 = por %p164, %p165
      %p167 = scmp.ne.s32.totalorder %s156, %s157
      %p168 = scmp.eq.s32.totalorder %s19, 0
      %p169 = por %p167, %p168
      %p170 = scmp.ne.s32.totalorder %s156, %s157
      %p171 = scmp.eq.s32.totalorder %s20, 3
      %p172 = por %p170, %p171
      %p174 = scmp.ne.s32.totalorder %s157, %s173
      %p175 = scmp.eq.s32.totalorder %s20, 0
      %p176 = por %p174, %p175
      %p177 = scmp.le.s32.totalorder 1, %s14
      %p178 = scmp.lt.s32.totalorder %s14, 5
      %p179 = pnand %p177, %p178
      %p180 = pneg %p179
      // Predicated region
      $region9: #{text2graph_pointer_forward.1} parent=5 // pred_check
        _
      $region10: #{text2graph_pointer_forward.1} parent=5 // pred_check_branch
        %182 = sbr.rel (%p179) target = $region12
      $region11: #{text2graph_pointer_forward.1} parent=5 // pred_region
        %s183 = ssub.s32 %s14, 1
        // Predicated region
        $region13: #{text2graph_pointer_forward.1} parent=11 // pred_check
          %p184 = pneg %p73
        $region14: #{text2graph_pointer_forward.1} parent=11 // pred_check_branch
          %186 = sbr.rel (%p184) target = $region16
        $region15: #{text2graph_pointer_forward.1} parent=11 // pred_region
          _
        $region16: #{text2graph_pointer_forward.1} parent=11 // pred_fallthru
          _
        // Predicated region
        $region17: #{text2graph_pointer_forward.1} parent=11 // pred_check
          %p187 = pneg %p94
        $region18: #{text2graph_pointer_forward.1} parent=11 // pred_check_branch
          %189 = sbr.rel (%p187) target = $region20
        $region19: #{text2graph_pointer_forward.1} parent=11 // pred_region
          _
        $region20: #{text2graph_pointer_forward.1} parent=11 // pred_fallthru
          _
        // Predicated region
        $region21: #{text2graph_pointer_forward.1} parent=11 // pred_check
          %p190 = pneg %p115
        $region22: #{text2graph_pointer_forward.1} parent=11 // pred_check_branch
          %192 = sbr.rel (%p190) target = $region24
        $region23: #{text2graph_pointer_forward.1} parent=11 // pred_region
          _
        $region24: #{text2graph_pointer_forward.1} parent=11 // pred_fallthru
          _
      $region12: #{text2graph_pointer_forward.1} parent=5 // pred_fallthru
        _
      %p193 = scmp.lt.s32.totalorder %s14, 4
      // Predicated region
      $region25: #{text2graph_pointer_forward.1} parent=5 // pred_check
        %p194 = pneg %p193
      $region26: #{text2graph_pointer_forward.1} parent=5 // pred_check_branch
        %196 = sbr.rel (%p194) target = $region28
      $region27: #{text2graph_pointer_forward.1} parent=5 // pred_region
        // Predicated region
        $region29: #{text2graph_pointer_forward.1} parent=27 // pred_check
          %p197 = pneg %p46
        $region30: #{text2graph_pointer_forward.1} parent=27 // pred_check_branch
          %199 = sbr.rel (%p197) target = $region32
        $region31: #{text2graph_pointer_forward.1} parent=27 // pred_region
          %p200 = scmp.lt.s32.totalorder %s21, 1
          %s201 = scalar_select %p200, %s21, 1
          %s202 = smul.addr %s201, 32
          %s203 = smul.addr %s202, 4
          %s204 = scalar_lea.vmem %s0, %s203
        $region32: #{text2graph_pointer_forward.1} parent=27 // pred_fallthru
          _
        // Predicated region
        $region33: #{text2graph_pointer_forward.1} parent=27 // pred_check
          %p205 = pneg %p135
        $region34: #{text2graph_pointer_forward.1} parent=27 // pred_check_branch
          %207 = sbr.rel (%p205) target = $region36
        $region35: #{text2graph_pointer_forward.1} parent=27 // pred_region
          %p208 = scmp.lt.s32.totalorder %s21, 1
          %s209 = scalar_select %p208, %s21, 1
          %s210 = smul.addr %s209, 2
          %s211 = scalar_lea.vmem %s4, %s210
        $region36: #{text2graph_pointer_forward.1} parent=27 // pred_fallthru
          _
      $region28: #{text2graph_pointer_forward.1} parent=5 // pred_fallthru
        _
      %p212 = scmp.le.s32.totalorder 1, %s14
      %p213 = scmp.lt.s32.totalorder %s14, 5
      %p214 = pnand %p212, %p213
      %p215 = pneg %p214
      // Predicated region
      $region37: #{text2graph_pointer_forward.1} parent=5 // pred_check
        _
      $region38: #{text2graph_pointer_forward.1} parent=5 // pred_check_branch
        %217 = sbr.rel (%p214) target = $region40
      $region39: #{text2graph_pointer_forward.1} parent=5 // pred_region
        %s218 = ssub.s32 %s14, 1
        %p219 = scmp.lt.s32.totalorder %s23, 1
        %s220 = scalar_select %p219, %s23, 1
        %s221 = smul.addr %s220, 32
        %s222 = smul.addr %s221, 4
        %s223 = scalar_lea.vmem %s0, %s222
        %p224 = pneg %p52
        %p225 = pneg %p49
        %p226 = pneg %p73
        %p227 = pneg %p70
        %p228 = pneg %p94
        %p229 = pneg %p91
        %p230 = pneg %p115
        %p231 = pneg %p112
        %p232 = scmp.lt.s32.totalorder %s23, 1
        %s233 = scalar_select %p232, %s23, 1
        %s234 = smul.addr %s233, 2
        %s235 = scalar_lea.vmem %s4, %s234
        %p236 = pneg %p141
        %p237 = pneg %p138
        %p238 = pneg %p169
        %p239 = pneg %p166
        %s240 = sand.u32 %s156, 1
        %s241 = scalar_lea.sflag [#allocation5], %s240
        %s242 = sand.u32 %s156, 1
        %s243 = smul.addr %s242, 256
        %s244 = scalar_lea.vmem [#allocation4], %s243
        %p245 = scmp.lt.s32.totalorder %s23, 1
        %s246 = scalar_select %p245, %s23, 1
        %s247 = smul.addr %s246, 32
        %s248 = smul.addr %s247, 4
        %s249 = scalar_lea.vmem %s0, %s248
        %p250 = scmp.lt.s32.totalorder %s23, 1
        %s251 = scalar_select %p250, %s23, 1
        %s252 = smul.addr %s251, 2
        %s253 = scalar_lea.vmem %s4, %s252
        %s254 = smul.u32 16, %s24
        %p256 = scmp.eq.s32.totalorder %s24, 0
        // Predicated region
        $region41: #{text2graph_pointer_forward.1} parent=39 // pred_check
          %p257 = pneg %p256
        $region42: #{text2graph_pointer_forward.1} parent=39 // pred_check_branch
          %259 = sbr.rel (%p257) target = $region44
        $region43: #{text2graph_pointer_forward.1} parent=39 // pred_region
          %v260 = vld [vmem:[%s249] sm:$0xf]
          %v261 = vld [vmem:[%s249 + $0x4] sm:$0xf]
          %v262 = vld [vmem:[%s249 + $0x8] sm:$0xf]
          %v263 = vld [vmem:[%s249 + $0xc] sm:$0xf]
          %v264 = vld [vmem:[%s249 + $0x10] sm:$0xf]
          %v265 = vld [vmem:[%s249 + $0x14] sm:$0xf]
          %v266 = vld [vmem:[%s249 + $0x18] sm:$0xf]
          %v267 = vld [vmem:[%s249 + $0x1c] sm:$0xf]
          %v268 = vld [vmem:[%s249 + $0x20] sm:$0xf]
          %v269 = vld [vmem:[%s249 + $0x24] sm:$0xf]
          %v270 = vld [vmem:[%s249 + $0x28] sm:$0xf]
          %v271 = vld [vmem:[%s249 + $0x2c] sm:$0xf]
          %v272 = vld [vmem:[%s249 + $0x30] sm:$0xf]
          %v273 = vld [vmem:[%s249 + $0x34] sm:$0xf]
          %v274 = vld [vmem:[%s249 + $0x38] sm:$0xf]
          %v275 = vld [vmem:[%s249 + $0x3c] sm:$0xf]
          %v276 = vld [vmem:[%s249 + $0x40] sm:$0xf]
          %v277 = vld [vmem:[%s249 + $0x44] sm:$0xf]
          %v278 = vld [vmem:[%s249 + $0x48] sm:$0xf]
          %v279 = vld [vmem:[%s249 + $0x4c] sm:$0xf]
          %v280 = vld [vmem:[%s249 + $0x50] sm:$0xf]
          %v281 = vld [vmem:[%s249 + $0x54] sm:$0xf]
          %v282 = vld [vmem:[%s249 + $0x58] sm:$0xf]
          %v283 = vld [vmem:[%s249 + $0x5c] sm:$0xf]
          %v284 = vld [vmem:[%s249 + $0x60] sm:$0xf]
          %v285 = vld [vmem:[%s249 + $0x64] sm:$0xf]
          %v286 = vld [vmem:[%s249 + $0x68] sm:$0xf]
          %v287 = vld [vmem:[%s249 + $0x6c] sm:$0xf]
          %v288 = vld [vmem:[%s249 + $0x70] sm:$0xf]
          %v289 = vld [vmem:[%s249 + $0x74] sm:$0xf]
          %v290 = vld [vmem:[%s249 + $0x78] sm:$0xf]
          %v291 = vld [vmem:[%s249 + $0x7c] sm:$0xf]
          %v292 = vld [vmem:[%s1] sm:$0xff]
          %v293 = vld [vmem:[%s1 + $0x8] sm:$0xff]
          %v294 = vld [vmem:[%s1 + $0x10] sm:$0xff]
          %v295 = vld [vmem:[%s1 + $0x18] sm:$0xff]
          %v296 = vld [vmem:[%s1 + $0x20] sm:$0xff]
          %v297 = vld [vmem:[%s1 + $0x28] sm:$0xff]
          %v298 = vld [vmem:[%s1 + $0x30] sm:$0xff]
          %v299 = vld [vmem:[%s1 + $0x38] sm:$0xff]
          %v300 = vld [vmem:[%s1 + $0x40] sm:$0xff]
          %v301 = vld [vmem:[%s1 + $0x48] sm:$0xff]
          %v302 = vld [vmem:[%s1 + $0x50] sm:$0xff]
          %v303 = vld [vmem:[%s1 + $0x58] sm:$0xff]
          %v304 = vld [vmem:[%s1 + $0x60] sm:$0xff]
          %v305 = vld [vmem:[%s1 + $0x68] sm:$0xff]
          %v306 = vld [vmem:[%s1 + $0x70] sm:$0xff]
          %v307 = vld [vmem:[%s1 + $0x78] sm:$0xff]
          %v308 = vld [vmem:[%s2] sm:$0x3]
          %v310 = vlaneseq
          %v311 = vshrl.u32 %v310, 7
          %v312 = vsub.s32 0, %v311
          %v313 = vrot.slane %v308, %v312
          %v314 = vlaneseq
          %v315 = vshrl.u32 %v314, 7
          %v316 = vsub.s32 1, %v315
          %v317 = vrot.slane %v308, %v316
          %v352 = vunpack.c.l.b16 %v260
          %v353 = vunpack.c.l.b16 %v261
          %v354 = vunpack.c.l.b16 %v262
          %v355 = vunpack.c.l.b16 %v263
          %v356 = vunpack.c.l.b16 %v264
          %v357 = vunpack.c.l.b16 %v265
          %v358 = vunpack.c.l.b16 %v266
          %v359 = vunpack.c.l.b16 %v267
          %v360 = vunpack.c.l.b16 %v268
          %v361 = vunpack.c.l.b16 %v269
          %v362 = vunpack.c.l.b16 %v270
          %v363 = vunpack.c.l.b16 %v271
          %v364 = vunpack.c.l.b16 %v272
          %v365 = vunpack.c.l.b16 %v273
          %v366 = vunpack.c.l.b16 %v274
          %v367 = vunpack.c.l.b16 %v275
          %v368 = vunpack.c.l.b16 %v276
          %v369 = vunpack.c.l.b16 %v277
          %v370 = vunpack.c.l.b16 %v278
          %v371 = vunpack.c.l.b16 %v279
          %v372 = vunpack.c.l.b16 %v280
          %v373 = vunpack.c.l.b16 %v281
          %v374 = vunpack.c.l.b16 %v282
          %v375 = vunpack.c.l.b16 %v283
          %v376 = vunpack.c.l.b16 %v284
          %v377 = vunpack.c.l.b16 %v285
          %v378 = vunpack.c.l.b16 %v286
          %v379 = vunpack.c.l.b16 %v287
          %v380 = vunpack.c.l.b16 %v288
          %v381 = vunpack.c.l.b16 %v289
          %v382 = vunpack.c.l.b16 %v290
          %v383 = vunpack.c.l.b16 %v291
          %v384 = vpack.c.b16 %v353, %v352
          %v385 = vpack.c.b16 %v355, %v354
          %v386 = vpack.c.b16 %v357, %v356
          %v387 = vpack.c.b16 %v359, %v358
          %v388 = vpack.c.b16 %v361, %v360
          %v389 = vpack.c.b16 %v363, %v362
          %v390 = vpack.c.b16 %v365, %v364
          %v391 = vpack.c.b16 %v367, %v366
          %v392 = vpack.c.b16 %v369, %v368
          %v393 = vpack.c.b16 %v371, %v370
          %v394 = vpack.c.b16 %v373, %v372
          %v395 = vpack.c.b16 %v375, %v374
          %v396 = vpack.c.b16 %v377, %v376
          %v397 = vpack.c.b16 %v379, %v378
          %v398 = vpack.c.b16 %v381, %v380
          %v399 = vpack.c.b16 %v383, %v382
          %v432 = vunpack.c.l.b16 %v292
          %v433 = vunpack.c.h.b16 %v292
          %v434 = vunpack.c.l.b16 %v293
          %v435 = vunpack.c.h.b16 %v293
          %v436 = vunpack.c.l.b16 %v294
          %v437 = vunpack.c.h.b16 %v294
          %v438 = vunpack.c.l.b16 %v295
          %v439 = vunpack.c.h.b16 %v295
          %v440 = vunpack.c.l.b16 %v296
          %v441 = vunpack.c.h.b16 %v296
          %v442 = vunpack.c.l.b16 %v297
          %v443 = vunpack.c.h.b16 %v297
          %v444 = vunpack.c.l.b16 %v298
          %v445 = vunpack.c.h.b16 %v298
          %v446 = vunpack.c.l.b16 %v299
          %v447 = vunpack.c.h.b16 %v299
          %v448 = vunpack.c.l.b16 %v300
          %v449 = vunpack.c.h.b16 %v300
          %v450 = vunpack.c.l.b16 %v301
          %v451 = vunpack.c.h.b16 %v301
          %v452 = vunpack.c.l.b16 %v302
          %v453 = vunpack.c.h.b16 %v302
          %v454 = vunpack.c.l.b16 %v303
          %v455 = vunpack.c.h.b16 %v303
          %v456 = vunpack.c.l.b16 %v304
          %v457 = vunpack.c.h.b16 %v304
          %v458 = vunpack.c.l.b16 %v305
          %v459 = vunpack.c.h.b16 %v305
          %v460 = vunpack.c.l.b16 %v306
          %v461 = vunpack.c.h.b16 %v306
          %v462 = vunpack.c.l.b16 %v307
          %v463 = vunpack.c.h.b16 %v307
          %v464 = vpack.c.b16 %v434, %v432
          %v465 = vpack.c.b16 %v435, %v433
          %v466 = vpack.c.b16 %v438, %v436
          %v467 = vpack.c.b16 %v439, %v437
          %v468 = vpack.c.b16 %v442, %v440
          %v469 = vpack.c.b16 %v443, %v441
          %v470 = vpack.c.b16 %v446, %v444
          %v471 = vpack.c.b16 %v447, %v445
          %v472 = vpack.c.b16 %v450, %v448
          %v473 = vpack.c.b16 %v451, %v449
          %v474 = vpack.c.b16 %v454, %v452
          %v475 = vpack.c.b16 %v455, %v453
          %v476 = vpack.c.b16 %v458, %v456
          %v477 = vpack.c.b16 %v459, %v457
          %v478 = vpack.c.b16 %v462, %v460
          %v479 = vpack.c.b16 %v463, %v461
          %496 = vmatprep.subr.bf16.mxu0 %v479
          %497 = vmatpush1.bf16.msra.mxu0 %v478
          %498 = vmatprep.subr.bf16.mxu0 %v477
          %499 = vmatpush1.bf16.msra.mxu0 %v476
          %500 = vmatprep.subr.bf16.mxu0 %v475
          %501 = vmatpush1.bf16.msra.mxu0 %v474
          %502 = vmatprep.subr.bf16.mxu0 %v473
          %503 = vmatpush1.bf16.msra.mxu0 %v472
          %504 = vmatprep.subr.bf16.mxu0 %v471
          %505 = vmatpush1.bf16.msra.mxu0 %v470
          %506 = vmatprep.subr.bf16.mxu0 %v469
          %507 = vmatpush1.bf16.msra.mxu0 %v468
          %508 = vmatprep.subr.bf16.mxu0 %v467
          %509 = vmatpush1.bf16.msra.mxu0 %v466
          %510 = vmatprep.subr.bf16.mxu0 %v465
          %511 = vmatpush1.bf16.msra.mxu0 %v464
          %512 = vmatprep.subr.bf16.mxu0 0
          %513 = vmatpush2.bf16.msra.mxu0 0
          %514 = vmatprep.subr.bf16.mxu0 0
          %515 = vmatpush2.bf16.msra.mxu0 0
          %516 = vmatprep.subr.bf16.mxu0 0
          %517 = vmatpush2.bf16.msra.mxu0 0
          %518 = vmatprep.subr.bf16.mxu0 0
          %519 = vmatpush2.bf16.msra.mxu0 0
          %520 = vmatprep.subr.bf16.mxu0 0
          %521 = vmatpush2.bf16.msra.mxu0 0
          %522 = vmatprep.subr.bf16.mxu0 0
          %523 = vmatpush2.bf16.msra.mxu0 0
          %524 = vmatprep.subr.bf16.mxu0 0
          %525 = vmatpush2.bf16.msra.mxu0 0
          %526 = vmatprep.subr.bf16.mxu0 0
          %527 = vmatpush2.bf16.msra.mxu0 0
          %528 = vmatprep.mubr.bf16.mxu0 0
          %529 = vmatmul.mubr.bf16.gmra.mxu0 %v384
          %v530 = vpop.f32.mrf.mxu0
          %v531 = vadd.f32 %v313, %v530
          %v532 = vpop.f32.mrf.mxu0
          %v533 = vadd.f32 %v317, %v532
          %v534 = vpop.f32.mrf.mxu0
          %v535 = vadd.f32 %v313, %v534
          %v536 = vpop.f32.mrf.mxu0
          %v537 = vadd.f32 %v317, %v536
          %538 = vmatprep.mubr.bf16.mxu0 0
          %539 = vmatmul.mubr.bf16.gmra.mxu0 %v385
          %v540 = vpop.f32.mrf.mxu0
          %v541 = vadd.f32 %v313, %v540
          %v542 = vpop.f32.mrf.mxu0
          %v543 = vadd.f32 %v317, %v542
          %v544 = vpop.f32.mrf.mxu0
          %v545 = vadd.f32 %v313, %v544
          %v546 = vpop.f32.mrf.mxu0
          %v547 = vadd.f32 %v317, %v546
          %548 = vmatprep.mubr.bf16.mxu0 0
          %549 = vmatmul.mubr.bf16.gmra.mxu0 %v386
          %v550 = vpop.f32.mrf.mxu0
          %v551 = vadd.f32 %v313, %v550
          %v552 = vpop.f32.mrf.mxu0
          %v553 = vadd.f32 %v317, %v552
          %v554 = vpop.f32.mrf.mxu0
          %v555 = vadd.f32 %v313, %v554
          %v556 = vpop.f32.mrf.mxu0
          %v557 = vadd.f32 %v317, %v556
          %558 = vmatprep.mubr.bf16.mxu0 0
          %559 = vmatmul.mubr.bf16.gmra.mxu0 %v387
          %v560 = vpop.f32.mrf.mxu0
          %v561 = vadd.f32 %v313, %v560
          %v562 = vpop.f32.mrf.mxu0
          %v563 = vadd.f32 %v317, %v562
          %v564 = vpop.f32.mrf.mxu0
          %v565 = vadd.f32 %v313, %v564
          %v566 = vpop.f32.mrf.mxu0
          %v567 = vadd.f32 %v317, %v566
          %568 = vmatprep.mubr.bf16.mxu0 0
          %569 = vmatmul.mubr.bf16.gmra.mxu0 %v388
          %v570 = vpop.f32.mrf.mxu0
          %v571 = vadd.f32 %v313, %v570
          %v572 = vpop.f32.mrf.mxu0
          %v573 = vadd.f32 %v317, %v572
          %v574 = vpop.f32.mrf.mxu0
          %v575 = vadd.f32 %v313, %v574
          %v576 = vpop.f32.mrf.mxu0
          %v577 = vadd.f32 %v317, %v576
          %578 = vmatprep.mubr.bf16.mxu0 0
          %579 = vmatmul.mubr.bf16.gmra.mxu0 %v389
          %v580 = vpop.f32.mrf.mxu0
          %v581 = vadd.f32 %v313, %v580
          %v582 = vpop.f32.mrf.mxu0
          %v583 = vadd.f32 %v317, %v582
          %v584 = vpop.f32.mrf.mxu0
          %v585 = vadd.f32 %v313, %v584
          %v586 = vpop.f32.mrf.mxu0
          %v587 = vadd.f32 %v317, %v586
          %588 = vmatprep.mubr.bf16.mxu0 0
          %589 = vmatmul.mubr.bf16.gmra.mxu0 %v390
          %v590 = vpop.f32.mrf.mxu0
          %v591 = vadd.f32 %v313, %v590
          %v592 = vpop.f32.mrf.mxu0
          %v593 = vadd.f32 %v317, %v592
          %v594 = vpop.f32.mrf.mxu0
          %v595 = vadd.f32 %v313, %v594
          %v596 = vpop.f32.mrf.mxu0
          %v597 = vadd.f32 %v317, %v596
          %598 = vmatprep.mubr.bf16.mxu0 0
          %599 = vmatmul.mubr.bf16.gmra.mxu0 %v391
          %v600 = vpop.f32.mrf.mxu0
          %v601 = vadd.f32 %v313, %v600
          %v602 = vpop.f32.mrf.mxu0
          %v603 = vadd.f32 %v317, %v602
          %v604 = vpop.f32.mrf.mxu0
          %v605 = vadd.f32 %v313, %v604
          %v606 = vpop.f32.mrf.mxu0
          %v607 = vadd.f32 %v317, %v606
          %608 = vmatprep.mubr.bf16.mxu0 0
          %609 = vmatmul.mubr.bf16.gmra.mxu0 %v392
          %v610 = vpop.f32.mrf.mxu0
          %v611 = vadd.f32 %v313, %v610
          %v612 = vpop.f32.mrf.mxu0
          %v613 = vadd.f32 %v317, %v612
          %v614 = vpop.f32.mrf.mxu0
          %v615 = vadd.f32 %v313, %v614
          %v616 = vpop.f32.mrf.mxu0
          %v617 = vadd.f32 %v317, %v616
          %618 = vmatprep.mubr.bf16.mxu0 0
          %619 = vmatmul.mubr.bf16.gmra.mxu0 %v393
          %v620 = vpop.f32.mrf.mxu0
          %v621 = vadd.f32 %v313, %v620
          %v622 = vpop.f32.mrf.mxu0
          %v623 = vadd.f32 %v317, %v622
          %v624 = vpop.f32.mrf.mxu0
          %v625 = vadd.f32 %v313, %v624
          %v626 = vpop.f32.mrf.mxu0
          %v627 = vadd.f32 %v317, %v626
          %628 = vmatprep.mubr.bf16.mxu0 0
          %629 = vmatmul.mubr.bf16.gmra.mxu0 %v394
          %v630 = vpop.f32.mrf.mxu0
          %v631 = vadd.f32 %v313, %v630
          %v632 = vpop.f32.mrf.mxu0
          %v633 = vadd.f32 %v317, %v632
          %v634 = vpop.f32.mrf.mxu0
          %v635 = vadd.f32 %v313, %v634
          %v636 = vpop.f32.mrf.mxu0
          %v637 = vadd.f32 %v317, %v636
          %638 = vmatprep.mubr.bf16.mxu0 0
          %639 = vmatmul.mubr.bf16.gmra.mxu0 %v395
          %v640 = vpop.f32.mrf.mxu0
          %v641 = vadd.f32 %v313, %v640
          %v642 = vpop.f32.mrf.mxu0
          %v643 = vadd.f32 %v317, %v642
          %v644 = vpop.f32.mrf.mxu0
          %v645 = vadd.f32 %v313, %v644
          %v646 = vpop.f32.mrf.mxu0
          %v647 = vadd.f32 %v317, %v646
          %648 = vmatprep.mubr.bf16.mxu0 0
          %649 = vmatmul.mubr.bf16.gmra.mxu0 %v396
          %v650 = vpop.f32.mrf.mxu0
          %v651 = vadd.f32 %v313, %v650
          %v652 = vpop.f32.mrf.mxu0
          %v653 = vadd.f32 %v317, %v652
          %v654 = vpop.f32.mrf.mxu0
          %v655 = vadd.f32 %v313, %v654
          %v656 = vpop.f32.mrf.mxu0
          %v657 = vadd.f32 %v317, %v656
          %658 = vmatprep.mubr.bf16.mxu0 0
          %659 = vmatmul.mubr.bf16.gmra.mxu0 %v397
          %v660 = vpop.f32.mrf.mxu0
          %v661 = vadd.f32 %v313, %v660
          %v662 = vpop.f32.mrf.mxu0
          %v663 = vadd.f32 %v317, %v662
          %v664 = vpop.f32.mrf.mxu0
          %v665 = vadd.f32 %v313, %v664
          %v666 = vpop.f32.mrf.mxu0
          %v667 = vadd.f32 %v317, %v666
          %668 = vmatprep.mubr.bf16.mxu0 0
          %669 = vmatmul.mubr.bf16.gmra.mxu0 %v398
          %v670 = vpop.f32.mrf.mxu0
          %v671 = vadd.f32 %v313, %v670
          %v672 = vpop.f32.mrf.mxu0
          %v673 = vadd.f32 %v317, %v672
          %v674 = vpop.f32.mrf.mxu0
          %v675 = vadd.f32 %v313, %v674
          %v676 = vpop.f32.mrf.mxu0
          %v677 = vadd.f32 %v317, %v676
          %678 = vmatprep.mubr.bf16.mxu0 0
          %679 = vmatmul.mubr.bf16.gmra.mxu0 %v399
          %v680 = vpop.f32.mrf.mxu0
          %v681 = vadd.f32 %v313, %v680
          %v682 = vpop.f32.mrf.mxu0
          %v683 = vadd.f32 %v317, %v682
          %v684 = vpop.f32.mrf.mxu0
          %v685 = vadd.f32 %v313, %v684
          %v686 = vpop.f32.mrf.mxu0
          %v687 = vadd.f32 %v317, %v686
          %688 = vdwg.mxu0
          %vm689 = vcmp.ge.f32.partialorder %v531, 0.0
          %vm690 = vcmp.ge.f32.partialorder %v533, 0.0
          %vm691 = vcmp.ge.f32.partialorder %v535, 0.0
          %vm692 = vcmp.ge.f32.partialorder %v537, 0.0
          %vm693 = vcmp.ge.f32.partialorder %v541, 0.0
          %vm694 = vcmp.ge.f32.partialorder %v543, 0.0
          %vm695 = vcmp.ge.f32.partialorder %v545, 0.0
          %vm696 = vcmp.ge.f32.partialorder %v547, 0.0
          %vm697 = vcmp.ge.f32.partialorder %v551, 0.0
          %vm698 = vcmp.ge.f32.partialorder %v553, 0.0
          %vm699 = vcmp.ge.f32.partialorder %v555, 0.0
          %vm700 = vcmp.ge.f32.partialorder %v557, 0.0
          %vm701 = vcmp.ge.f32.partialorder %v561, 0.0
          %vm702 = vcmp.ge.f32.partialorder %v563, 0.0
          %vm703 = vcmp.ge.f32.partialorder %v565, 0.0
          %vm704 = vcmp.ge.f32.partialorder %v567, 0.0
          %vm705 = vcmp.ge.f32.partialorder %v571, 0.0
          %vm706 = vcmp.ge.f32.partialorder %v573, 0.0
          %vm707 = vcmp.ge.f32.partialorder %v575, 0.0
          %vm708 = vcmp.ge.f32.partialorder %v577, 0.0
          %vm709 = vcmp.ge.f32.partialorder %v581, 0.0
          %vm710 = vcmp.ge.f32.partialorder %v583, 0.0
          %vm711 = vcmp.ge.f32.partialorder %v585, 0.0
          %vm712 = vcmp.ge.f32.partialorder %v587, 0.0
          %vm713 = vcmp.ge.f32.partialorder %v591, 0.0
          %vm714 = vcmp.ge.f32.partialorder %v593, 0.0
          %vm715 = vcmp.ge.f32.partialorder %v595, 0.0
          %vm716 = vcmp.ge.f32.partialorder %v597, 0.0
          %vm717 = vcmp.ge.f32.partialorder %v601, 0.0
          %vm718 = vcmp.ge.f32.partialorder %v603, 0.0
          %vm719 = vcmp.ge.f32.partialorder %v605, 0.0
          %vm720 = vcmp.ge.f32.partialorder %v607, 0.0
          %vm721 = vcmp.ge.f32.partialorder %v611, 0.0
          %vm722 = vcmp.ge.f32.partialorder %v613, 0.0
          %vm723 = vcmp.ge.f32.partialorder %v615, 0.0
          %vm724 = vcmp.ge.f32.partialorder %v617, 0.0
          %vm725 = vcmp.ge.f32.partialorder %v621, 0.0
          %vm726 = vcmp.ge.f32.partialorder %v623, 0.0
          %vm727 = vcmp.ge.f32.partialorder %v625, 0.0
          %vm728 = vcmp.ge.f32.partialorder %v627, 0.0
          %vm729 = vcmp.ge.f32.partialorder %v631, 0.0
          %vm730 = vcmp.ge.f32.partialorder %v633, 0.0
          %vm731 = vcmp.ge.f32.partialorder %v635, 0.0
          %vm732 = vcmp.ge.f32.partialorder %v637, 0.0
          %vm733 = vcmp.ge.f32.partialorder %v641, 0.0
          %vm734 = vcmp.ge.f32.partialorder %v643, 0.0
          %vm735 = vcmp.ge.f32.partialorder %v645, 0.0
          %vm736 = vcmp.ge.f32.partialorder %v647, 0.0
          %vm737 = vcmp.ge.f32.partialorder %v651, 0.0
          %vm738 = vcmp.ge.f32.partialorder %v653, 0.0
          %vm739 = vcmp.ge.f32.partialorder %v655, 0.0
          %vm740 = vcmp.ge.f32.partialorder %v657, 0.0
          %vm741 = vcmp.ge.f32.partialorder %v661, 0.0
          %vm742 = vcmp.ge.f32.partialorder %v663, 0.0
          %vm743 = vcmp.ge.f32.partialorder %v665, 0.0
          %vm744 = vcmp.ge.f32.partialorder %v667, 0.0
          %vm745 = vcmp.ge.f32.partialorder %v671, 0.0
          %vm746 = vcmp.ge.f32.partialorder %v673, 0.0
          %vm747 = vcmp.ge.f32.partialorder %v675, 0.0
          %vm748 = vcmp.ge.f32.partialorder %v677, 0.0
          %vm749 = vcmp.ge.f32.partialorder %v681, 0.0
          %vm750 = vcmp.ge.f32.partialorder %v683, 0.0
          %vm751 = vcmp.ge.f32.partialorder %v685, 0.0
          %vm752 = vcmp.ge.f32.partialorder %v687, 0.0
          %v753 = vmul.f32 %v531, 0.01
          %v754 = vmul.f32 %v533, 0.01
          %v755 = vmul.f32 %v535, 0.01
          %v756 = vmul.f32 %v537, 0.01
          %v757 = vmul.f32 %v541, 0.01
          %v758 = vmul.f32 %v543, 0.01
          %v759 = vmul.f32 %v545, 0.01
          %v760 = vmul.f32 %v547, 0.01
          %v761 = vmul.f32 %v551, 0.01
          %v762 = vmul.f32 %v553, 0.01
          %v763 = vmul.f32 %v555, 0.01
          %v764 = vmul.f32 %v557, 0.01
          %v765 = vmul.f32 %v561, 0.01
          %v766 = vmul.f32 %v563, 0.01
          %v767 = vmul.f32 %v565, 0.01
          %v768 = vmul.f32 %v567, 0.01
          %v769 = vmul.f32 %v571, 0.01
          %v770 = vmul.f32 %v573, 0.01
          %v771 = vmul.f32 %v575, 0.01
          %v772 = vmul.f32 %v577, 0.01
          %v773 = vmul.f32 %v581, 0.01
          %v774 = vmul.f32 %v583, 0.01
          %v775 = vmul.f32 %v585, 0.01
          %v776 = vmul.f32 %v587, 0.01
          %v777 = vmul.f32 %v591, 0.01
          %v778 = vmul.f32 %v593, 0.01
          %v779 = vmul.f32 %v595, 0.01
          %v780 = vmul.f32 %v597, 0.01
          %v781 = vmul.f32 %v601, 0.01
          %v782 = vmul.f32 %v603, 0.01
          %v783 = vmul.f32 %v605, 0.01
          %v784 = vmul.f32 %v607, 0.01
          %v785 = vmul.f32 %v611, 0.01
          %v786 = vmul.f32 %v613, 0.01
          %v787 = vmul.f32 %v615, 0.01
          %v788 = vmul.f32 %v617, 0.01
          %v789 = vmul.f32 %v621, 0.01
          %v790 = vmul.f32 %v623, 0.01
          %v791 = vmul.f32 %v625, 0.01
          %v792 = vmul.f32 %v627, 0.01
          %v793 = vmul.f32 %v631, 0.01
          %v794 = vmul.f32 %v633, 0.01
          %v795 = vmul.f32 %v635, 0.01
          %v796 = vmul.f32 %v637, 0.01
          %v797 = vmul.f32 %v641, 0.01
          %v798 = vmul.f32 %v643, 0.01
          %v799 = vmul.f32 %v645, 0.01
          %v800 = vmul.f32 %v647, 0.01
          %v801 = vmul.f32 %v651, 0.01
          %v802 = vmul.f32 %v653, 0.01
          %v803 = vmul.f32 %v655, 0.01
          %v804 = vmul.f32 %v657, 0.01
          %v805 = vmul.f32 %v661, 0.01
          %v806 = vmul.f32 %v663, 0.01
          %v807 = vmul.f32 %v665, 0.01
          %v808 = vmul.f32 %v667, 0.01
          %v809 = vmul.f32 %v671, 0.01
          %v810 = vmul.f32 %v673, 0.01
          %v811 = vmul.f32 %v675, 0.01
          %v812 = vmul.f32 %v677, 0.01
          %v813 = vmul.f32 %v681, 0.01
          %v814 = vmul.f32 %v683, 0.01
          %v815 = vmul.f32 %v685, 0.01
          %v816 = vmul.f32 %v687, 0.01
          %v817 = vsel %vm689, %v531, %v753
          %v818 = vsel %vm690, %v533, %v754
          %v819 = vsel %vm691, %v535, %v755
          %v820 = vsel %vm692, %v537, %v756
          %v821 = vsel %vm693, %v541, %v757
          %v822 = vsel %vm694, %v543, %v758
          %v823 = vsel %vm695, %v545, %v759
          %v824 = vsel %vm696, %v547, %v760
          %v825 = vsel %vm697, %v551, %v761
          %v826 = vsel %vm698, %v553, %v762
          %v827 = vsel %vm699, %v555, %v763
          %v828 = vsel %vm700, %v557, %v764
          %v829 = vsel %vm701, %v561, %v765
          %v830 = vsel %vm702, %v563, %v766
          %v831 = vsel %vm703, %v565, %v767
          %v832 = vsel %vm704, %v567, %v768
          %v833 = vsel %vm705, %v571, %v769
          %v834 = vsel %vm706, %v573, %v770
          %v835 = vsel %vm707, %v575, %v771
          %v836 = vsel %vm708, %v577, %v772
          %v837 = vsel %vm709, %v581, %v773
          %v838 = vsel %vm710, %v583, %v774
          %v839 = vsel %vm711, %v585, %v775
          %v840 = vsel %vm712, %v587, %v776
          %v841 = vsel %vm713, %v591, %v777
          %v842 = vsel %vm714, %v593, %v778
          %v843 = vsel %vm715, %v595, %v779
          %v844 = vsel %vm716, %v597, %v780
          %v845 = vsel %vm717, %v601, %v781
          %v846 = vsel %vm718, %v603, %v782
          %v847 = vsel %vm719, %v605, %v783
          %v848 = vsel %vm720, %v607, %v784
          %v849 = vsel %vm721, %v611, %v785
          %v850 = vsel %vm722, %v613, %v786
          %v851 = vsel %vm723, %v615, %v787
          %v852 = vsel %vm724, %v617, %v788
          %v853 = vsel %vm725, %v621, %v789
          %v854 = vsel %vm726, %v623, %v790
          %v855 = vsel %vm727, %v625, %v791
          %v856 = vsel %vm728, %v627, %v792
          %v857 = vsel %vm729, %v631, %v793
          %v858 = vsel %vm730, %v633, %v794
          %v859 = vsel %vm731, %v635, %v795
          %v860 = vsel %vm732, %v637, %v796
          %v861 = vsel %vm733, %v641, %v797
          %v862 = vsel %vm734, %v643, %v798
          %v863 = vsel %vm735, %v645, %v799
          %v864 = vsel %vm736, %v647, %v800
          %v865 = vsel %vm737, %v651, %v801
          %v866 = vsel %vm738, %v653, %v802
          %v867 = vsel %vm739, %v655, %v803
          %v868 = vsel %vm740, %v657, %v804
          %v869 = vsel %vm741, %v661, %v805
          %v870 = vsel %vm742, %v663, %v806
          %v871 = vsel %vm743, %v665, %v807
          %v872 = vsel %vm744, %v667, %v808
          %v873 = vsel %vm745, %v671, %v809
          %v874 = vsel %vm746, %v673, %v810
          %v875 = vsel %vm747, %v675, %v811
          %v876 = vsel %vm748, %v677, %v812
          %v877 = vsel %vm749, %v681, %v813
          %v878 = vsel %vm750, %v683, %v814
          %v879 = vsel %vm751, %v685, %v815
          %v880 = vsel %vm752, %v687, %v816
          %v881 = vpack.c.bf16 %v819, %v817
          %v882 = vpack.c.bf16 %v823, %v821
          %v883 = vpack.c.bf16 %v827, %v825
          %v884 = vpack.c.bf16 %v831, %v829
          %v885 = vpack.c.bf16 %v835, %v833
          %v886 = vpack.c.bf16 %v839, %v837
          %v887 = vpack.c.bf16 %v843, %v841
          %v888 = vpack.c.bf16 %v847, %v845
          %v889 = vpack.c.bf16 %v851, %v849
          %v890 = vpack.c.bf16 %v855, %v853
          %v891 = vpack.c.bf16 %v859, %v857
          %v892 = vpack.c.bf16 %v863, %v861
          %v893 = vpack.c.bf16 %v867, %v865
          %v894 = vpack.c.bf16 %v871, %v869
          %v895 = vpack.c.bf16 %v875, %v873
          %v896 = vpack.c.bf16 %v879, %v877
          %v897 = vpack.c.bf16 %v820, %v818
          %v898 = vpack.c.bf16 %v824, %v822
          %v899 = vpack.c.bf16 %v828, %v826
          %v900 = vpack.c.bf16 %v832, %v830
          %v901 = vpack.c.bf16 %v836, %v834
          %v902 = vpack.c.bf16 %v840, %v838
          %v903 = vpack.c.bf16 %v844, %v842
          %v904 = vpack.c.bf16 %v848, %v846
          %v905 = vpack.c.bf16 %v852, %v850
          %v906 = vpack.c.bf16 %v856, %v854
          %v907 = vpack.c.bf16 %v860, %v858
          %v908 = vpack.c.bf16 %v864, %v862
          %v909 = vpack.c.bf16 %v868, %v866
          %v910 = vpack.c.bf16 %v872, %v870
          %v911 = vpack.c.bf16 %v876, %v874
          %v912 = vpack.c.bf16 %v880, %v878
          %v929 = vunpack.c.l.b16 %v897
          %v930 = vunpack.c.h.b16 %v897
          %v931 = vunpack.c.l.b16 %v898
          %v932 = vunpack.c.h.b16 %v898
          %v933 = vunpack.c.l.b16 %v899
          %v934 = vunpack.c.h.b16 %v899
          %v935 = vunpack.c.l.b16 %v900
          %v936 = vunpack.c.h.b16 %v900
          %v937 = vunpack.c.l.b16 %v901
          %v938 = vunpack.c.h.b16 %v901
          %v939 = vunpack.c.l.b16 %v902
          %v940 = vunpack.c.h.b16 %v902
          %v941 = vunpack.c.l.b16 %v903
          %v942 = vunpack.c.h.b16 %v903
          %v943 = vunpack.c.l.b16 %v904
          %v944 = vunpack.c.h.b16 %v904
          %v945 = vunpack.c.l.b16 %v905
          %v946 = vunpack.c.h.b16 %v905
          %v947 = vunpack.c.l.b16 %v906
          %v948 = vunpack.c.h.b16 %v906
          %v949 = vunpack.c.l.b16 %v907
          %v950 = vunpack.c.h.b16 %v907
          %v951 = vunpack.c.l.b16 %v908
          %v952 = vunpack.c.h.b16 %v908
          %v953 = vunpack.c.l.b16 %v909
          %v954 = vunpack.c.h.b16 %v909
          %v955 = vunpack.c.l.b16 %v910
          %v956 = vunpack.c.h.b16 %v910
          %v957 = vunpack.c.l.b16 %v911
          %v958 = vunpack.c.h.b16 %v911
          %v959 = vunpack.c.l.b16 %v912
          %v960 = vunpack.c.h.b16 %v912
          %v961 = vpack.c.b16 %v929, %v929
          %v962 = vpack.c.b16 %v930, %v930
          %v963 = vpack.c.b16 %v931, %v931
          %v964 = vpack.c.b16 %v932, %v932
          %v965 = vpack.c.b16 %v933, %v933
          %v966 = vpack.c.b16 %v934, %v934
          %v967 = vpack.c.b16 %v935, %v935
          %v968 = vpack.c.b16 %v936, %v936
          %v969 = vpack.c.b16 %v937, %v937
          %v970 = vpack.c.b16 %v938, %v938
          %v971 = vpack.c.b16 %v939, %v939
          %v972 = vpack.c.b16 %v940, %v940
          %v973 = vpack.c.b16 %v941, %v941
          %v974 = vpack.c.b16 %v942, %v942
          %v975 = vpack.c.b16 %v943, %v943
          %v976 = vpack.c.b16 %v944, %v944
          %v977 = vpack.c.b16 %v945, %v945
          %v978 = vpack.c.b16 %v946, %v946
          %v979 = vpack.c.b16 %v947, %v947
          %v980 = vpack.c.b16 %v948, %v948
          %v981 = vpack.c.b16 %v949, %v949
          %v982 = vpack.c.b16 %v950, %v950
          %v983 = vpack.c.b16 %v951, %v951
          %v984 = vpack.c.b16 %v952, %v952
          %v985 = vpack.c.b16 %v953, %v953
          %v986 = vpack.c.b16 %v954, %v954
          %v987 = vpack.c.b16 %v955, %v955
          %v988 = vpack.c.b16 %v956, %v956
          %v989 = vpack.c.b16 %v957, %v957
          %v990 = vpack.c.b16 %v958, %v958
          %v991 = vpack.c.b16 %v959, %v959
          %v992 = vpack.c.b16 %v960, %v960
          %1025 = vst [vmem:[#allocation3] sm:$0xf] %v961
          %1026 = vst [vmem:[#allocation3 + $0x4] sm:$0xf] %v962
          %1027 = vst [vmem:[#allocation3 + $0x8] sm:$0xf] %v963
          %1028 = vst [vmem:[#allocation3 + $0xc] sm:$0xf] %v964
          %1029 = vst [vmem:[#allocation3 + $0x10] sm:$0xf] %v965
          %1030 = vst [vmem:[#allocation3 + $0x14] sm:$0xf] %v966
          %1031 = vst [vmem:[#allocation3 + $0x18] sm:$0xf] %v967
          %1032 = vst [vmem:[#allocation3 + $0x1c] sm:$0xf] %v968
          %1033 = vst [vmem:[#allocation3 + $0x20] sm:$0xf] %v969
          %1034 = vst [vmem:[#allocation3 + $0x24] sm:$0xf] %v970
          %1035 = vst [vmem:[#allocation3 + $0x28] sm:$0xf] %v971
          %1036 = vst [vmem:[#allocation3 + $0x2c] sm:$0xf] %v972
          %1037 = vst [vmem:[#allocation3 + $0x30] sm:$0xf] %v973
          %1038 = vst [vmem:[#allocation3 + $0x34] sm:$0xf] %v974
          %1039 = vst [vmem:[#allocation3 + $0x38] sm:$0xf] %v975
          %1040 = vst [vmem:[#allocation3 + $0x3c] sm:$0xf] %v976
          %1041 = vst [vmem:[#allocation3 + $0x40] sm:$0xf] %v977
          %1042 = vst [vmem:[#allocation3 + $0x44] sm:$0xf] %v978
          %1043 = vst [vmem:[#allocation3 + $0x48] sm:$0xf] %v979
          %1044 = vst [vmem:[#allocation3 + $0x4c] sm:$0xf] %v980
          %1045 = vst [vmem:[#allocation3 + $0x50] sm:$0xf] %v981
          %1046 = vst [vmem:[#allocation3 + $0x54] sm:$0xf] %v982
          %1047 = vst [vmem:[#allocation3 + $0x58] sm:$0xf] %v983
          %1048 = vst [vmem:[#allocation3 + $0x5c] sm:$0xf] %v984
          %1049 = vst [vmem:[#allocation3 + $0x60] sm:$0xf] %v985
          %1050 = vst [vmem:[#allocation3 + $0x64] sm:$0xf] %v986
          %1051 = vst [vmem:[#allocation3 + $0x68] sm:$0xf] %v987
          %1052 = vst [vmem:[#allocation3 + $0x6c] sm:$0xf] %v988
          %1053 = vst [vmem:[#allocation3 + $0x70] sm:$0xf] %v989
          %1054 = vst [vmem:[#allocation3 + $0x74] sm:$0xf] %v990
          %1055 = vst [vmem:[#allocation3 + $0x78] sm:$0xf] %v991
          %1056 = vst [vmem:[#allocation3 + $0x7c] sm:$0xf] %v992
          %v1057 = vld [vmem:[%s3] sm:$0xf]
          %v1058 = vld [vmem:[%s3 + $0x4] sm:$0xf]
          %v1059 = vld [vmem:[%s3 + $0x8] sm:$0xf]
          %v1060 = vld [vmem:[%s3 + $0xc] sm:$0xf]
          %v1061 = vld [vmem:[%s3 + $0x10] sm:$0xf]
          %v1062 = vld [vmem:[%s3 + $0x14] sm:$0xf]
          %v1063 = vld [vmem:[%s3 + $0x18] sm:$0xf]
          %v1064 = vld [vmem:[%s3 + $0x1c] sm:$0xf]
          %v1065 = vld [vmem:[%s3 + $0x20] sm:$0xf]
          %v1066 = vld [vmem:[%s3 + $0x24] sm:$0xf]
          %v1067 = vld [vmem:[%s3 + $0x28] sm:$0xf]
          %v1068 = vld [vmem:[%s3 + $0x2c] sm:$0xf]
          %v1069 = vld [vmem:[%s3 + $0x30] sm:$0xf]
          %v1070 = vld [vmem:[%s3 + $0x34] sm:$0xf]
          %v1071 = vld [vmem:[%s3 + $0x38] sm:$0xf]
          %v1072 = vld [vmem:[%s3 + $0x3c] sm:$0xf]
          %v1089 = vunpack.c.l.b16 %v1057
          %v1090 = vunpack.c.l.b16 %v1058
          %v1091 = vunpack.c.l.b16 %v1059
          %v1092 = vunpack.c.l.b16 %v1060
          %v1093 = vunpack.c.l.b16 %v1061
          %v1094 = vunpack.c.l.b16 %v1062
          %v1095 = vunpack.c.l.b16 %v1063
          %v1096 = vunpack.c.l.b16 %v1064
          %v1097 = vunpack.c.l.b16 %v1065
          %v1098 = vunpack.c.l.b16 %v1066
          %v1099 = vunpack.c.l.b16 %v1067
          %v1100 = vunpack.c.l.b16 %v1068
          %v1101 = vunpack.c.l.b16 %v1069
          %v1102 = vunpack.c.l.b16 %v1070
          %v1103 = vunpack.c.l.b16 %v1071
          %v1104 = vunpack.c.l.b16 %v1072
          %v1105 = vpack.c.b16 %v1090, %v1089
          %v1106 = vpack.c.b16 %v1092, %v1091
          %v1107 = vpack.c.b16 %v1094, %v1093
          %v1108 = vpack.c.b16 %v1096, %v1095
          %v1109 = vpack.c.b16 %v1098, %v1097
          %v1110 = vpack.c.b16 %v1100, %v1099
          %v1111 = vpack.c.b16 %v1102, %v1101
          %v1112 = vpack.c.b16 %v1104, %v1103
          %1121 = vmatprep.subr.bf16.mxu0 0
          %1122 = vmatpush1.bf16.msra.mxu0 %v1112
          %1123 = vmatprep.subr.bf16.mxu0 0
          %1124 = vmatpush1.bf16.msra.mxu0 %v1111
          %1125 = vmatprep.subr.bf16.mxu0 0
          %1126 = vmatpush1.bf16.msra.mxu0 %v1110
          %1127 = vmatprep.subr.bf16.mxu0 0
          %1128 = vmatpush1.bf16.msra.mxu0 %v1109
          %1129 = vmatprep.subr.bf16.mxu0 0
          %1130 = vmatpush1.bf16.msra.mxu0 %v1108
          %1131 = vmatprep.subr.bf16.mxu0 0
          %1132 = vmatpush1.bf16.msra.mxu0 %v1107
          %1133 = vmatprep.subr.bf16.mxu0 0
          %1134 = vmatpush1.bf16.msra.mxu0 %v1106
          %1135 = vmatprep.subr.bf16.mxu0 0
          %1136 = vmatpush1.bf16.msra.mxu0 %v1105
          %1137 = vmatprep.subr.bf16.mxu0 0
          %1138 = vmatpush2.bf16.msra.mxu0 0
          %1139 = vmatprep.subr.bf16.mxu0 0
          %1140 = vmatpush2.bf16.msra.mxu0 0
          %1141 = vmatprep.subr.bf16.mxu0 0
          %1142 = vmatpush2.bf16.msra.mxu0 0
          %1143 = vmatprep.subr.bf16.mxu0 0
          %1144 = vmatpush2.bf16.msra.mxu0 0
          %1145 = vmatprep.subr.bf16.mxu0 0
          %1146 = vmatpush2.bf16.msra.mxu0 0
          %1147 = vmatprep.subr.bf16.mxu0 0
          %1148 = vmatpush2.bf16.msra.mxu0 0
          %1149 = vmatprep.subr.bf16.mxu0 0
          %1150 = vmatpush2.bf16.msra.mxu0 0
          %1151 = vmatprep.subr.bf16.mxu0 0
          %1152 = vmatpush2.bf16.msra.mxu0 0
          %1153 = vmatprep.mubr.bf16.mxu0 0
          %1154 = vmatmul.mubr.bf16.gmra.mxu0 %v881
          %v1155 = vpop.f32.mrf.mxu0
          %v1156 = vadd.f32 0.0, %v1155
          %v1157 = vpop.f32.mrf.mxu0
          %v1158 = vpop.f32.mrf.mxu0
          %v1159 = vadd.f32 0.0, %v1158
          %v1160 = vpop.f32.mrf.mxu0
          %1161 = vmatprep.mubr.bf16.mxu0 0
          %1162 = vmatmul.mubr.bf16.gmra.mxu0 %v882
          %v1163 = vpop.f32.mrf.mxu0
          %v1164 = vadd.f32 0.0, %v1163
          %v1165 = vpop.f32.mrf.mxu0
          %v1166 = vpop.f32.mrf.mxu0
          %v1167 = vadd.f32 0.0, %v1166
          %v1168 = vpop.f32.mrf.mxu0
          %1169 = vmatprep.mubr.bf16.mxu0 0
          %1170 = vmatmul.mubr.bf16.gmra.mxu0 %v883
          %v1171 = vpop.f32.mrf.mxu0
          %v1172 = vadd.f32 0.0, %v1171
          %v1173 = vpop.f32.mrf.mxu0
          %v1174 = vpop.f32.mrf.mxu0
          %v1175 = vadd.f32 0.0, %v1174
          %v1176 = vpop.f32.mrf.mxu0
          %1177 = vmatprep.mubr.bf16.mxu0 0
          %1178 = vmatmul.mubr.bf16.gmra.mxu0 %v884
          %v1179 = vpop.f32.mrf.mxu0
          %v1180 = vadd.f32 0.0, %v1179
          %v1181 = vpop.f32.mrf.mxu0
          %v1182 = vpop.f32.mrf.mxu0
          %v1183 = vadd.f32 0.0, %v1182
          %v1184 = vpop.f32.mrf.mxu0
          %1185 = vmatprep.mubr.bf16.mxu0 0
          %1186 = vmatmul.mubr.bf16.gmra.mxu0 %v885
          %v1187 = vpop.f32.mrf.mxu0
          %v1188 = vadd.f32 0.0, %v1187
          %v1189 = vpop.f32.mrf.mxu0
          %v1190 = vpop.f32.mrf.mxu0
          %v1191 = vadd.f32 0.0, %v1190
          %v1192 = vpop.f32.mrf.mxu0
          %1193 = vmatprep.mubr.bf16.mxu0 0
          %1194 = vmatmul.mubr.bf16.gmra.mxu0 %v886
          %v1195 = vpop.f32.mrf.mxu0
          %v1196 = vadd.f32 0.0, %v1195
          %v1197 = vpop.f32.mrf.mxu0
          %v1198 = vpop.f32.mrf.mxu0
          %v1199 = vadd.f32 0.0, %v1198
          %v1200 = vpop.f32.mrf.mxu0
          %1201 = vmatprep.mubr.bf16.mxu0 0
          %1202 = vmatmul.mubr.bf16.gmra.mxu0 %v887
          %v1203 = vpop.f32.mrf.mxu0
          %v1204 = vadd.f32 0.0, %v1203
          %v1205 = vpop.f32.mrf.mxu0
          %v1206 = vpop.f32.mrf.mxu0
          %v1207 = vadd.f32 0.0, %v1206
          %v1208 = vpop.f32.mrf.mxu0
          %1209 = vmatprep.mubr.bf16.mxu0 0
          %1210 = vmatmul.mubr.bf16.gmra.mxu0 %v888
          %v1211 = vpop.f32.mrf.mxu0
          %v1212 = vadd.f32 0.0, %v1211
          %v1213 = vpop.f32.mrf.mxu0
          %v1214 = vpop.f32.mrf.mxu0
          %v1215 = vadd.f32 0.0, %v1214
          %v1216 = vpop.f32.mrf.mxu0
          %1217 = vmatprep.mubr.bf16.mxu0 0
          %1218 = vmatmul.mubr.bf16.gmra.mxu0 %v889
          %v1219 = vpop.f32.mrf.mxu0
          %v1220 = vadd.f32 0.0, %v1219
          %v1221 = vpop.f32.mrf.mxu0
          %v1222 = vpop.f32.mrf.mxu0
          %v1223 = vadd.f32 0.0, %v1222
          %v1224 = vpop.f32.mrf.mxu0
          %1225 = vmatprep.mubr.bf16.mxu0 0
          %1226 = vmatmul.mubr.bf16.gmra.mxu0 %v890
          %v1227 = vpop.f32.mrf.mxu0
          %v1228 = vadd.f32 0.0, %v1227
          %v1229 = vpop.f32.mrf.mxu0
          %v1230 = vpop.f32.mrf.mxu0
          %v1231 = vadd.f32 0.0, %v1230
          %v1232 = vpop.f32.mrf.mxu0
          %1233 = vmatprep.mubr.bf16.mxu0 0
          %1234 = vmatmul.mubr.bf16.gmra.mxu0 %v891
          %v1235 = vpop.f32.mrf.mxu0
          %v1236 = vadd.f32 0.0, %v1235
          %v1237 = vpop.f32.mrf.mxu0
          %v1238 = vpop.f32.mrf.mxu0
          %v1239 = vadd.f32 0.0, %v1238
          %v1240 = vpop.f32.mrf.mxu0
          %1241 = vmatprep.mubr.bf16.mxu0 0
          %1242 = vmatmul.mubr.bf16.gmra.mxu0 %v892
          %v1243 = vpop.f32.mrf.mxu0
          %v1244 = vadd.f32 0.0, %v1243
          %v1245 = vpop.f32.mrf.mxu0
          %v1246 = vpop.f32.mrf.mxu0
          %v1247 = vadd.f32 0.0, %v1246
          %v1248 = vpop.f32.mrf.mxu0
          %1249 = vmatprep.mubr.bf16.mxu0 0
          %1250 = vmatmul.mubr.bf16.gmra.mxu0 %v893
          %v1251 = vpop.f32.mrf.mxu0
          %v1252 = vadd.f32 0.0, %v1251
          %v1253 = vpop.f32.mrf.mxu0
          %v1254 = vpop.f32.mrf.mxu0
          %v1255 = vadd.f32 0.0, %v1254
          %v1256 = vpop.f32.mrf.mxu0
          %1257 = vmatprep.mubr.bf16.mxu0 0
          %1258 = vmatmul.mubr.bf16.gmra.mxu0 %v894
          %v1259 = vpop.f32.mrf.mxu0
          %v1260 = vadd.f32 0.0, %v1259
          %v1261 = vpop.f32.mrf.mxu0
          %v1262 = vpop.f32.mrf.mxu0
          %v1263 = vadd.f32 0.0, %v1262
          %v1264 = vpop.f32.mrf.mxu0
          %1265 = vmatprep.mubr.bf16.mxu0 0
          %1266 = vmatmul.mubr.bf16.gmra.mxu0 %v895
          %v1267 = vpop.f32.mrf.mxu0
          %v1268 = vadd.f32 0.0, %v1267
          %v1269 = vpop.f32.mrf.mxu0
          %v1270 = vpop.f32.mrf.mxu0
          %v1271 = vadd.f32 0.0, %v1270
          %v1272 = vpop.f32.mrf.mxu0
          %1273 = vmatprep.mubr.bf16.mxu0 0
          %1274 = vmatmul.mubr.bf16.gmra.mxu0 %v896
          %v1275 = vpop.f32.mrf.mxu0
          %v1276 = vadd.f32 0.0, %v1275
          %v1277 = vpop.f32.mrf.mxu0
          %v1278 = vpop.f32.mrf.mxu0
          %v1279 = vadd.f32 0.0, %v1278
          %v1280 = vpop.f32.mrf.mxu0
          %1281 = vdwg.mxu0
          %v1282 = vpack.c.bf16 %v1159, %v1156
          %v1283 = vpack.c.bf16 %v1167, %v1164
          %v1284 = vpack.c.bf16 %v1175, %v1172
          %v1285 = vpack.c.bf16 %v1183, %v1180
          %v1286 = vpack.c.bf16 %v1191, %v1188
          %v1287 = vpack.c.bf16 %v1199, %v1196
          %v1288 = vpack.c.bf16 %v1207, %v1204
          %v1289 = vpack.c.bf16 %v1215, %v1212
          %v1290 = vpack.c.bf16 %v1223, %v1220
          %v1291 = vpack.c.bf16 %v1231, %v1228
          %v1292 = vpack.c.bf16 %v1239, %v1236
          %v1293 = vpack.c.bf16 %v1247, %v1244
          %v1294 = vpack.c.bf16 %v1255, %v1252
          %v1295 = vpack.c.bf16 %v1263, %v1260
          %v1296 = vpack.c.bf16 %v1271, %v1268
          %v1297 = vpack.c.bf16 %v1279, %v1276
          %v1314 = vunpack.c.l.b16 %v1282
          %v1315 = vunpack.c.h.b16 %v1282
          %v1316 = vunpack.c.l.b16 %v1283
          %v1317 = vunpack.c.h.b16 %v1283
          %v1318 = vunpack.c.l.b16 %v1284
          %v1319 = vunpack.c.h.b16 %v1284
          %v1320 = vunpack.c.l.b16 %v1285
          %v1321 = vunpack.c.h.b16 %v1285
          %v1322 = vunpack.c.l.b16 %v1286
          %v1323 = vunpack.c.h.b16 %v1286
          %v1324 = vunpack.c.l.b16 %v1287
          %v1325 = vunpack.c.h.b16 %v1287
          %v1326 = vunpack.c.l.b16 %v1288
          %v1327 = vunpack.c.h.b16 %v1288
          %v1328 = vunpack.c.l.b16 %v1289
          %v1329 = vunpack.c.h.b16 %v1289
          %v1330 = vunpack.c.l.b16 %v1290
          %v1331 = vunpack.c.h.b16 %v1290
          %v1332 = vunpack.c.l.b16 %v1291
          %v1333 = vunpack.c.h.b16 %v1291
          %v1334 = vunpack.c.l.b16 %v1292
          %v1335 = vunpack.c.h.b16 %v1292
          %v1336 = vunpack.c.l.b16 %v1293
          %v1337 = vunpack.c.h.b16 %v1293
          %v1338 = vunpack.c.l.b16 %v1294
          %v1339 = vunpack.c.h.b16 %v1294
          %v1340 = vunpack.c.l.b16 %v1295
          %v1341 = vunpack.c.h.b16 %v1295
          %v1342 = vunpack.c.l.b16 %v1296
          %v1343 = vunpack.c.h.b16 %v1296
          %v1344 = vunpack.c.l.b16 %v1297
          %v1345 = vunpack.c.h.b16 %v1297
          %v1346 = vpack.c.b16 %v1314, %v1314
          %v1347 = vpack.c.b16 %v1315, %v1315
          %v1348 = vpack.c.b16 %v1316, %v1316
          %v1349 = vpack.c.b16 %v1317, %v1317
          %v1350 = vpack.c.b16 %v1318, %v1318
          %v1351 = vpack.c.b16 %v1319, %v1319
          %v1352 = vpack.c.b16 %v1320, %v1320
          %v1353 = vpack.c.b16 %v1321, %v1321
          %v1354 = vpack.c.b16 %v1322, %v1322
          %v1355 = vpack.c.b16 %v1323, %v1323
          %v1356 = vpack.c.b16 %v1324, %v1324
          %v1357 = vpack.c.b16 %v1325, %v1325
          %v1358 = vpack.c.b16 %v1326, %v1326
          %v1359 = vpack.c.b16 %v1327, %v1327
          %v1360 = vpack.c.b16 %v1328, %v1328
          %v1361 = vpack.c.b16 %v1329, %v1329
          %v1362 = vpack.c.b16 %v1330, %v1330
          %v1363 = vpack.c.b16 %v1331, %v1331
          %v1364 = vpack.c.b16 %v1332, %v1332
          %v1365 = vpack.c.b16 %v1333, %v1333
          %v1366 = vpack.c.b16 %v1334, %v1334
          %v1367 = vpack.c.b16 %v1335, %v1335
          %v1368 = vpack.c.b16 %v1336, %v1336
          %v1369 = vpack.c.b16 %v1337, %v1337
          %v1370 = vpack.c.b16 %v1338, %v1338
          %v1371 = vpack.c.b16 %v1339, %v1339
          %v1372 = vpack.c.b16 %v1340, %v1340
          %v1373 = vpack.c.b16 %v1341, %v1341
          %v1374 = vpack.c.b16 %v1342, %v1342
          %v1375 = vpack.c.b16 %v1343, %v1343
          %v1376 = vpack.c.b16 %v1344, %v1344
          %v1377 = vpack.c.b16 %v1345, %v1345
          %1410 = vst [vmem:[#allocation2] sm:$0xf] %v1346
          %1411 = vst [vmem:[#allocation2 + $0x4] sm:$0xf] %v1347
          %1412 = vst [vmem:[#allocation2 + $0x8] sm:$0xf] %v1348
          %1413 = vst [vmem:[#allocation2 + $0xc] sm:$0xf] %v1349
          %1414 = vst [vmem:[#allocation2 + $0x10] sm:$0xf] %v1350
          %1415 = vst [vmem:[#allocation2 + $0x14] sm:$0xf] %v1351
          %1416 = vst [vmem:[#allocation2 + $0x18] sm:$0xf] %v1352
          %1417 = vst [vmem:[#allocation2 + $0x1c] sm:$0xf] %v1353
          %1418 = vst [vmem:[#allocation2 + $0x20] sm:$0xf] %v1354
          %1419 = vst [vmem:[#allocation2 + $0x24] sm:$0xf] %v1355
          %1420 = vst [vmem:[#allocation2 + $0x28] sm:$0xf] %v1356
          %1421 = vst [vmem:[#allocation2 + $0x2c] sm:$0xf] %v1357
          %1422 = vst [vmem:[#allocation2 + $0x30] sm:$0xf] %v1358
          %1423 = vst [vmem:[#allocation2 + $0x34] sm:$0xf] %v1359
          %1424 = vst [vmem:[#allocation2 + $0x38] sm:$0xf] %v1360
          %1425 = vst [vmem:[#allocation2 + $0x3c] sm:$0xf] %v1361
          %1426 = vst [vmem:[#allocation2 + $0x40] sm:$0xf] %v1362
          %1427 = vst [vmem:[#allocation2 + $0x44] sm:$0xf] %v1363
          %1428 = vst [vmem:[#allocation2 + $0x48] sm:$0xf] %v1364
          %1429 = vst [vmem:[#allocation2 + $0x4c] sm:$0xf] %v1365
          %1430 = vst [vmem:[#allocation2 + $0x50] sm:$0xf] %v1366
          %1431 = vst [vmem:[#allocation2 + $0x54] sm:$0xf] %v1367
          %1432 = vst [vmem:[#allocation2 + $0x58] sm:$0xf] %v1368
          %1433 = vst [vmem:[#allocation2 + $0x5c] sm:$0xf] %v1369
          %1434 = vst [vmem:[#allocation2 + $0x60] sm:$0xf] %v1370
          %1435 = vst [vmem:[#allocation2 + $0x64] sm:$0xf] %v1371
          %1436 = vst [vmem:[#allocation2 + $0x68] sm:$0xf] %v1372
          %1437 = vst [vmem:[#allocation2 + $0x6c] sm:$0xf] %v1373
          %1438 = vst [vmem:[#allocation2 + $0x70] sm:$0xf] %v1374
          %1439 = vst [vmem:[#allocation2 + $0x74] sm:$0xf] %v1375
          %1440 = vst [vmem:[#allocation2 + $0x78] sm:$0xf] %v1376
          %1441 = vst [vmem:[#allocation2 + $0x7c] sm:$0xf] %v1377
        $region44: #{text2graph_pointer_forward.1} parent=39 // pred_fallthru
          _
        %s1442 = smul.u32 %s24, 128
        %s1443 = sshra.s32 %s1442, 3
        %s1444 = sand.u32 %s1442, 7
        %s1445 = smul.addr %s1443, 4
        %s1446 = scalar_lea.vmem [#allocation3], %s1445
        %v1447 = vld [vmem:[%s1446] sm:$0xf]
        %v1448 = vld [vmem:[%s1446 + $0x4] sm:$0xf]
        %v1449 = vld [vmem:[%s1446 + $0x8] sm:$0xf]
        %v1450 = vld [vmem:[%s1446 + $0xc] sm:$0xf]
        %v1451 = vld [vmem:[%s1446 + $0x10] sm:$0xf]
        %v1452 = vld [vmem:[%s1446 + $0x14] sm:$0xf]
        %v1453 = vld [vmem:[%s1446 + $0x18] sm:$0xf]
        %v1454 = vld [vmem:[%s1446 + $0x1c] sm:$0xf]
        %v1455 = vld [vmem:[%s1446 + $0x20] sm:$0xf]
        %v1456 = vld [vmem:[%s1446 + $0x24] sm:$0xf]
        %v1457 = vld [vmem:[%s1446 + $0x28] sm:$0xf]
        %v1458 = vld [vmem:[%s1446 + $0x2c] sm:$0xf]
        %v1459 = vld [vmem:[%s1446 + $0x30] sm:$0xf]
        %v1460 = vld [vmem:[%s1446 + $0x34] sm:$0xf]
        %v1461 = vld [vmem:[%s1446 + $0x38] sm:$0xf]
        %v1462 = vld [vmem:[%s1446 + $0x3c] sm:$0xf]
        %v1463 = vld [vmem:[#allocation2] sm:$0xf]
        %v1464 = vld [vmem:[#allocation2 + $0x4] sm:$0xf]
        %v1465 = vld [vmem:[#allocation2 + $0x8] sm:$0xf]
        %v1466 = vld [vmem:[#allocation2 + $0xc] sm:$0xf]
        %v1467 = vld [vmem:[#allocation2 + $0x10] sm:$0xf]
        %v1468 = vld [vmem:[#allocation2 + $0x14] sm:$0xf]
        %v1469 = vld [vmem:[#allocation2 + $0x18] sm:$0xf]
        %v1470 = vld [vmem:[#allocation2 + $0x1c] sm:$0xf]
        %v1471 = vld [vmem:[#allocation2 + $0x20] sm:$0xf]
        %v1472 = vld [vmem:[#allocation2 + $0x24] sm:$0xf]
        %v1473 = vld [vmem:[#allocation2 + $0x28] sm:$0xf]
        %v1474 = vld [vmem:[#allocation2 + $0x2c] sm:$0xf]
        %v1475 = vld [vmem:[#allocation2 + $0x30] sm:$0xf]
        %v1476 = vld [vmem:[#allocation2 + $0x34] sm:$0xf]
        %v1477 = vld [vmem:[#allocation2 + $0x38] sm:$0xf]
        %v1478 = vld [vmem:[#allocation2 + $0x3c] sm:$0xf]
        %v1479 = vld [vmem:[#allocation2 + $0x40] sm:$0xf]
        %v1480 = vld [vmem:[#allocation2 + $0x44] sm:$0xf]
        %v1481 = vld [vmem:[#allocation2 + $0x48] sm:$0xf]
        %v1482 = vld [vmem:[#allocation2 + $0x4c] sm:$0xf]
        %v1483 = vld [vmem:[#allocation2 + $0x50] sm:$0xf]
        %v1484 = vld [vmem:[#allocation2 + $0x54] sm:$0xf]
        %v1485 = vld [vmem:[#allocation2 + $0x58] sm:$0xf]
        %v1486 = vld [vmem:[#allocation2 + $0x5c] sm:$0xf]
        %v1487 = vld [vmem:[#allocation2 + $0x60] sm:$0xf]
        %v1488 = vld [vmem:[#allocation2 + $0x64] sm:$0xf]
        %v1489 = vld [vmem:[#allocation2 + $0x68] sm:$0xf]
        %v1490 = vld [vmem:[#allocation2 + $0x6c] sm:$0xf]
        %v1491 = vld [vmem:[#allocation2 + $0x70] sm:$0xf]
        %v1492 = vld [vmem:[#allocation2 + $0x74] sm:$0xf]
        %v1493 = vld [vmem:[#allocation2 + $0x78] sm:$0xf]
        %v1494 = vld [vmem:[#allocation2 + $0x7c] sm:$0xf]
        %v1495 = vld [vmem:[%s253] sm:$0x3]
        %v1497 = vlaneseq
        %v1498 = vshrl.u32 %v1497, 7
        %v1499 = vsub.s32 0, %v1498
        %v1500 = vrot.slane %v1495, %v1499
        %v1501 = vlaneseq
        %v1502 = vshrl.u32 %v1501, 7
        %v1503 = vsub.s32 1, %v1502
        %v1504 = vrot.slane %v1495, %v1503
        %v1523 = vunpack.c.l.b16 %v1447
        %v1524 = vunpack.c.l.b16 %v1448
        %v1525 = vunpack.c.l.b16 %v1449
        %v1526 = vunpack.c.l.b16 %v1450
        %v1527 = vunpack.c.l.b16 %v1451
        %v1528 = vunpack.c.l.b16 %v1452
        %v1529 = vunpack.c.l.b16 %v1453
        %v1530 = vunpack.c.l.b16 %v1454
        %v1531 = vunpack.c.l.b16 %v1455
        %v1532 = vunpack.c.l.b16 %v1456
        %v1533 = vunpack.c.l.b16 %v1457
        %v1534 = vunpack.c.l.b16 %v1458
        %v1535 = vunpack.c.l.b16 %v1459
        %v1536 = vunpack.c.l.b16 %v1460
        %v1537 = vunpack.c.l.b16 %v1461
        %v1538 = vunpack.c.l.b16 %v1462
        %v1539 = vpack.c.b16 %v1524, %v1523
        %v1540 = vpack.c.b16 %v1526, %v1525
        %v1541 = vpack.c.b16 %v1528, %v1527
        %v1542 = vpack.c.b16 %v1530, %v1529
        %v1543 = vpack.c.b16 %v1532, %v1531
        %v1544 = vpack.c.b16 %v1534, %v1533
        %v1545 = vpack.c.b16 %v1536, %v1535
        %v1546 = vpack.c.b16 %v1538, %v1537
        %v1587 = vunpack.c.l.b16 %v1463
        %v1588 = vunpack.c.l.b16 %v1464
        %v1589 = vunpack.c.l.b16 %v1465
        %v1590 = vunpack.c.l.b16 %v1466
        %v1591 = vunpack.c.l.b16 %v1467
        %v1592 = vunpack.c.l.b16 %v1468
        %v1593 = vunpack.c.l.b16 %v1469
        %v1594 = vunpack.c.l.b16 %v1470
        %v1595 = vunpack.c.l.b16 %v1471
        %v1596 = vunpack.c.l.b16 %v1472
        %v1597 = vunpack.c.l.b16 %v1473
        %v1598 = vunpack.c.l.b16 %v1474
        %v1599 = vunpack.c.l.b16 %v1475
        %v1600 = vunpack.c.l.b16 %v1476
        %v1601 = vunpack.c.l.b16 %v1477
        %v1602 = vunpack.c.l.b16 %v1478
        %v1603 = vunpack.c.l.b16 %v1479
        %v1604 = vunpack.c.l.b16 %v1480
        %v1605 = vunpack.c.l.b16 %v1481
        %v1606 = vunpack.c.l.b16 %v1482
        %v1607 = vunpack.c.l.b16 %v1483
        %v1608 = vunpack.c.l.b16 %v1484
        %v1609 = vunpack.c.l.b16 %v1485
        %v1610 = vunpack.c.l.b16 %v1486
        %v1611 = vunpack.c.l.b16 %v1487
        %v1612 = vunpack.c.l.b16 %v1488
        %v1613 = vunpack.c.l.b16 %v1489
        %v1614 = vunpack.c.l.b16 %v1490
        %v1615 = vunpack.c.l.b16 %v1491
        %v1616 = vunpack.c.l.b16 %v1492
        %v1617 = vunpack.c.l.b16 %v1493
        %v1618 = vunpack.c.l.b16 %v1494
        %v1619 = vpack.c.b16 %v1588, %v1587
        %v1620 = vpack.c.b16 %v1590, %v1589
        %v1621 = vpack.c.b16 %v1592, %v1591
        %v1622 = vpack.c.b16 %v1594, %v1593
        %v1623 = vpack.c.b16 %v1596, %v1595
        %v1624 = vpack.c.b16 %v1598, %v1597
        %v1625 = vpack.c.b16 %v1600, %v1599
        %v1626 = vpack.c.b16 %v1602, %v1601
        %v1627 = vpack.c.b16 %v1604, %v1603
        %v1628 = vpack.c.b16 %v1606, %v1605
        %v1629 = vpack.c.b16 %v1608, %v1607
        %v1630 = vpack.c.b16 %v1610, %v1609
        %v1631 = vpack.c.b16 %v1612, %v1611
        %v1632 = vpack.c.b16 %v1614, %v1613
        %v1633 = vpack.c.b16 %v1616, %v1615
        %v1634 = vpack.c.b16 %v1618, %v1617
        %1651 = vmatprep.subr.bf16.mxu0 0
        %1652 = vmatpush1.bf16.xpose.msra.mxu0 %v1626
        %1653 = vmatprep.subr.bf16.mxu0 0
        %1654 = vmatpush1.bf16.xpose.msra.mxu0 %v1625
        %1655 = vmatprep.subr.bf16.mxu0 0
        %1656 = vmatpush1.bf16.xpose.msra.mxu0 %v1624
        %1657 = vmatprep.subr.bf16.mxu0 0
        %1658 = vmatpush1.bf16.xpose.msra.mxu0 %v1623
        %1659 = vmatprep.subr.bf16.mxu0 0
        %1660 = vmatpush1.bf16.xpose.msra.mxu0 %v1622
        %1661 = vmatprep.subr.bf16.mxu0 0
        %1662 = vmatpush1.bf16.xpose.msra.mxu0 %v1621
        %1663 = vmatprep.subr.bf16.mxu0 0
        %1664 = vmatpush1.bf16.xpose.msra.mxu0 %v1620
        %1665 = vmatprep.subr.bf16.mxu0 0
        %1666 = vmatpush1.bf16.xpose.msra.mxu0 %v1619
        %1667 = vmatprep.subr.bf16.mxu0 0
        %1668 = vmatpush2.bf16.xpose.msra.mxu0 %v1634
        %1669 = vmatprep.subr.bf16.mxu0 0
        %1670 = vmatpush2.bf16.xpose.msra.mxu0 %v1633
        %1671 = vmatprep.subr.bf16.mxu0 0
        %1672 = vmatpush2.bf16.xpose.msra.mxu0 %v1632
        %1673 = vmatprep.subr.bf16.mxu0 0
        %1674 = vmatpush2.bf16.xpose.msra.mxu0 %v1631
        %1675 = vmatprep.subr.bf16.mxu0 0
        %1676 = vmatpush2.bf16.xpose.msra.mxu0 %v1630
        %1677 = vmatprep.subr.bf16.mxu0 0
        %1678 = vmatpush2.bf16.xpose.msra.mxu0 %v1629
        %1679 = vmatprep.subr.bf16.mxu0 0
        %1680 = vmatpush2.bf16.xpose.msra.mxu0 %v1628
        %1681 = vmatprep.subr.bf16.mxu0 0
        %1682 = vmatpush2.bf16.xpose.msra.mxu0 %v1627
        %1683 = vmatprep.mubr.bf16.mxu0 0
        %1684 = vmatmul.mubr.bf16.gmra.mxu0 %v1539
        %v1685 = vpop.f32.mrf.mxu0
        %v1686 = vadd.f32 %v1500, %v1685
        %v1687 = vpop.f32.mrf.mxu0
        %v1688 = vadd.f32 %v1504, %v1687
        %v1689 = vpop.f32.mrf.mxu0
        %v1690 = vadd.f32 %v1500, %v1689
        %v1691 = vpop.f32.mrf.mxu0
        %v1692 = vadd.f32 %v1504, %v1691
        %1693 = vmatprep.mubr.bf16.mxu0 0
        %1694 = vmatmul.mubr.bf16.gmra.mxu0 %v1540
        %v1695 = vpop.f32.mrf.mxu0
        %v1696 = vadd.f32 %v1500, %v1695
        %v1697 = vpop.f32.mrf.mxu0
        %v1698 = vadd.f32 %v1504, %v1697
        %v1699 = vpop.f32.mrf.mxu0
        %v1700 = vadd.f32 %v1500, %v1699
        %v1701 = vpop.f32.mrf.mxu0
        %v1702 = vadd.f32 %v1504, %v1701
        %1703 = vmatprep.mubr.bf16.mxu0 0
        %1704 = vmatmul.mubr.bf16.gmra.mxu0 %v1541
        %v1705 = vpop.f32.mrf.mxu0
        %v1706 = vadd.f32 %v1500, %v1705
        %v1707 = vpop.f32.mrf.mxu0
        %v1708 = vadd.f32 %v1504, %v1707
        %v1709 = vpop.f32.mrf.mxu0
        %v1710 = vadd.f32 %v1500, %v1709
        %v1711 = vpop.f32.mrf.mxu0
        %v1712 = vadd.f32 %v1504, %v1711
        %1713 = vmatprep.mubr.bf16.mxu0 0
        %1714 = vmatmul.mubr.bf16.gmra.mxu0 %v1542
        %v1715 = vpop.f32.mrf.mxu0
        %v1716 = vadd.f32 %v1500, %v1715
        %v1717 = vpop.f32.mrf.mxu0
        %v1718 = vadd.f32 %v1504, %v1717
        %v1719 = vpop.f32.mrf.mxu0
        %v1720 = vadd.f32 %v1500, %v1719
        %v1721 = vpop.f32.mrf.mxu0
        %v1722 = vadd.f32 %v1504, %v1721
        %1723 = vmatprep.mubr.bf16.mxu0 0
        %1724 = vmatmul.mubr.bf16.gmra.mxu0 %v1543
        %v1725 = vpop.f32.mrf.mxu0
        %v1726 = vadd.f32 %v1500, %v1725
        %v1727 = vpop.f32.mrf.mxu0
        %v1728 = vadd.f32 %v1504, %v1727
        %v1729 = vpop.f32.mrf.mxu0
        %v1730 = vadd.f32 %v1500, %v1729
        %v1731 = vpop.f32.mrf.mxu0
        %v1732 = vadd.f32 %v1504, %v1731
        %1733 = vmatprep.mubr.bf16.mxu0 0
        %1734 = vmatmul.mubr.bf16.gmra.mxu0 %v1544
        %v1735 = vpop.f32.mrf.mxu0
        %v1736 = vadd.f32 %v1500, %v1735
        %v1737 = vpop.f32.mrf.mxu0
        %v1738 = vadd.f32 %v1504, %v1737
        %v1739 = vpop.f32.mrf.mxu0
        %v1740 = vadd.f32 %v1500, %v1739
        %v1741 = vpop.f32.mrf.mxu0
        %v1742 = vadd.f32 %v1504, %v1741
        %1743 = vmatprep.mubr.bf16.mxu0 0
        %1744 = vmatmul.mubr.bf16.gmra.mxu0 %v1545
        %v1745 = vpop.f32.mrf.mxu0
        %v1746 = vadd.f32 %v1500, %v1745
        %v1747 = vpop.f32.mrf.mxu0
        %v1748 = vadd.f32 %v1504, %v1747
        %v1749 = vpop.f32.mrf.mxu0
        %v1750 = vadd.f32 %v1500, %v1749
        %v1751 = vpop.f32.mrf.mxu0
        %v1752 = vadd.f32 %v1504, %v1751
        %1753 = vmatprep.mubr.bf16.mxu0 0
        %1754 = vmatmul.mubr.bf16.gmra.mxu0 %v1546
        %v1755 = vpop.f32.mrf.mxu0
        %v1756 = vadd.f32 %v1500, %v1755
        %v1757 = vpop.f32.mrf.mxu0
        %v1758 = vadd.f32 %v1504, %v1757
        %v1759 = vpop.f32.mrf.mxu0
        %v1760 = vadd.f32 %v1500, %v1759
        %v1761 = vpop.f32.mrf.mxu0
        %v1762 = vadd.f32 %v1504, %v1761
        %1763 = vdwg.mxu0
        %1764 = vst [vmem:[%s244] sm:$0xff] %v1686
        %1765 = vst [vmem:[%s244 + $0x8] sm:$0xff] %v1688
        %1766 = vst [vmem:[%s244 + $0x10] sm:$0xff] %v1690
        %1767 = vst [vmem:[%s244 + $0x18] sm:$0xff] %v1692
        %1768 = vst [vmem:[%s244 + $0x20] sm:$0xff] %v1696
        %1769 = vst [vmem:[%s244 + $0x28] sm:$0xff] %v1698
        %1770 = vst [vmem:[%s244 + $0x30] sm:$0xff] %v1700
        %1771 = vst [vmem:[%s244 + $0x38] sm:$0xff] %v1702
        %1772 = vst [vmem:[%s244 + $0x40] sm:$0xff] %v1706
        %1773 = vst [vmem:[%s244 + $0x48] sm:$0xff] %v1708
        %1774 = vst [vmem:[%s244 + $0x50] sm:$0xff] %v1710
        %1775 = vst [vmem:[%s244 + $0x58] sm:$0xff] %v1712
        %1776 = vst [vmem:[%s244 + $0x60] sm:$0xff] %v1716
        %1777 = vst [vmem:[%s244 + $0x68] sm:$0xff] %v1718
        %1778 = vst [vmem:[%s244 + $0x70] sm:$0xff] %v1720
        %1779 = vst [vmem:[%s244 + $0x78] sm:$0xff] %v1722
        %1780 = vst [vmem:[%s244 + $0x80] sm:$0xff] %v1726
        %1781 = vst [vmem:[%s244 + $0x88] sm:$0xff] %v1728
        %1782 = vst [vmem:[%s244 + $0x90] sm:$0xff] %v1730
        %1783 = vst [vmem:[%s244 + $0x98] sm:$0xff] %v1732
        %1784 = vst [vmem:[%s244 + $0xa0] sm:$0xff] %v1736
        %1785 = vst [vmem:[%s244 + $0xa8] sm:$0xff] %v1738
        %1786 = vst [vmem:[%s244 + $0xb0] sm:$0xff] %v1740
        %1787 = vst [vmem:[%s244 + $0xb8] sm:$0xff] %v1742
        %1788 = vst [vmem:[%s244 + $0xc0] sm:$0xff] %v1746
        %1789 = vst [vmem:[%s244 + $0xc8] sm:$0xff] %v1748
        %1790 = vst [vmem:[%s244 + $0xd0] sm:$0xff] %v1750
        %1791 = vst [vmem:[%s244 + $0xd8] sm:$0xff] %v1752
        %1792 = vst [vmem:[%s244 + $0xe0] sm:$0xff] %v1756
        %1793 = vst [vmem:[%s244 + $0xe8] sm:$0xff] %v1758
        %1794 = vst [vmem:[%s244 + $0xf0] sm:$0xff] %v1760
        %1795 = vst [vmem:[%s244 + $0xf8] sm:$0xff] %v1762
        %s1796 = sand.u32 %s156, 1
        %s1797 = scalar_lea.sflag [#allocation5], %s1796
        %s1798 = sand.u32 %s156, 1
        %s1799 = smul.addr %s1798, 256
        %s1800 = scalar_lea.vmem [#allocation4], %s1799
        // Predicated region
        $region45: #{text2graph_pointer_forward.1} parent=39 // pred_check
          %p1801 = pneg %p166
        $region46: #{text2graph_pointer_forward.1} parent=39 // pred_check_branch
          %1803 = sbr.rel (%p1801) target = $region48
        $region47: #{text2graph_pointer_forward.1} parent=39 // pred_region
          %s1804 = smul.u32 16, %s24
          %s1806 = ssub.s32 4096, 4096
          %1807 = vsyncadd %s1797, %s1806
          %s1808 = smul.addr %s1804, 2
          %s1809 = smul.addr %s23, 64
          %s1810 = sadd.s32 %s1808, %s1809
          %s1811 = smul.addr %s1810, 128
          %s1812 = scalar_lea.hbm %s5, %s1811
          %s1813 = sshll.u32 %s1800, 4
          %s1814 = int_to_ptr.vmem [resolvable:$true] %s1813
          %1819 = dma.vmem_to_hbm [thread:$0]  %s1814, 4096, %s1812, %s1797, 256, 256, 16
        $region48: #{text2graph_pointer_forward.1} parent=39 // pred_fallthru
          _
      $region40: #{text2graph_pointer_forward.1} parent=5 // pred_fallthru
        _
      %p1820 = scmp.le.s32.totalorder 2, %s14
      // Predicated region
      $region49: #{text2graph_pointer_forward.1} parent=5 // pred_check
        %p1821 = pneg %p1820
      $region50: #{text2graph_pointer_forward.1} parent=5 // pred_check_branch
        %1823 = sbr.rel (%p1821) target = $region52
      $region51: #{text2graph_pointer_forward.1} parent=5 // pred_region
        %s1824 = ssub.s32 %s14, 2
        // Predicated region
        $region53: #{text2graph_pointer_forward.1} parent=51 // pred_check
          %p1825 = pneg %p172
        $region54: #{text2graph_pointer_forward.1} parent=51 // pred_check_branch
          %1827 = sbr.rel (%p1825) target = $region56
        $region55: #{text2graph_pointer_forward.1} parent=51 // pred_region
          %s1828 = sand.u32 %s157, 1
          %s1829 = scalar_lea.sflag [#allocation5], %s1828
          %s1830 = sand.u32 %s157, 1
          %s1831 = smul.addr %s1830, 256
          %s1832 = scalar_lea.vmem [#allocation4], %s1831
          %1833 = dma.done %s1829, 4096
        $region56: #{text2graph_pointer_forward.1} parent=51 // pred_fallthru
          _
      $region52: #{text2graph_pointer_forward.1} parent=5 // pred_fallthru
        _
    $region6: #{text2graph_pointer_forward.1} parent=1 // loop_footer
      %s18 = sadd.s32 1, %s14
    $region7: #{text2graph_pointer_forward.1} parent=1 // loop_footer_branch
      %13 = sbr.rel target = $region3
    $region8: #{text2graph_pointer_forward.1} parent=1 // loop_exit
      _
    %1834 = vsyncpa [#allocation5], 1
    %s1835 = scalar_lea.sflag [#allocation5], 1
    %1836 = vsyncpa %s1835, 1

</llo_original>
